<compile_context>
chip_gen: v5e
topology: v5e:2x2
jax: 0.10.0
libtpu: 0.0.40
codegen_flags: <defaults>
</compile_context>

<pallas_src>
import jax
import jax.numpy as jnp
from jax import lax
from jax.experimental import pallas as pl
from jax.experimental.pallas import tpu as pltpu

THETA0 = 3
THETA = 5
PAD = (THETA - 1) // 2      # 2: enough halo for both the 3x3 and 5x5 pools
NEG = -1e30                 # stands in for -inf padding of F.max_pool2d
EPS = 1e-7


def _sum_hw(x):
    # (C, H, W) -> (C, 1); keep everything >= 2-D for TPU friendliness
    return jnp.sum(jnp.sum(x, axis=2), axis=1, keepdims=True)


def _pool1d_h(bufh_ref, x, r):
    """Stride-1 'same' max pool of radius r along H via a H-padded scratch."""
    C, H, W = x.shape
    bufh_ref[:, PAD:PAD + H, :] = x                       # interior only
    out = bufh_ref[:, PAD - r:PAD - r + H, :]             # seed with d = -r
    for d in range(1 - r, r + 1):
        out = jnp.maximum(out, bufh_ref[:, PAD + d:PAD + d + H, :])
    return out


def _pool1d_w(bufw_ref, x, r):
    """Stride-1 'same' max pool of radius r along W via a W-padded scratch."""
    C, H, W = x.shape
    bufw_ref[:, :, PAD:PAD + W] = x                       # interior only
    out = bufw_ref[:, :, PAD - r:PAD - r + W]             # seed with d = -r
    for d in range(1 - r, r + 1):
        out = jnp.maximum(out, bufw_ref[:, :, PAD + d:PAD + d + W])
    return out


def _maxpool_same(bufh_ref, bufw_ref, x, k):
    """k x k stride-1 max pool with implicit -inf padding, done separably."""
    r = (k - 1) // 2
    return _pool1d_w(bufw_ref, _pool1d_h(bufh_ref, x, r), r)


def boundary_loss_kernel(pred_ref, gt_ref, bf1_ref, bufh_ref, bufw_ref):
    _, C, H, W = pred_ref.shape

    # Write the NEG borders once per batch slab; the 1-D pool passes only ever
    # overwrite the interiors, so the borders stay valid across all 4 pools.
    bufh_ref[:, :PAD, :] = jnp.full((C, PAD, W), NEG, dtype=jnp.float32)
    bufh_ref[:, PAD + H:, :] = jnp.full((C, PAD, W), NEG, dtype=jnp.float32)
    bufw_ref[:, :, :PAD] = jnp.full((C, H, PAD), NEG, dtype=jnp.float32)
    bufw_ref[:, :, PAD + W:] = jnp.full((C, H, PAD), NEG, dtype=jnp.float32)

    pred = pred_ref[0].astype(jnp.float32)   # (C, H, W) logits, f32 in-kernel
    gt = gt_ref[0]                           # (H, W) int32 class map

    # softmax over the channel axis (exp + approx reciprocal -> EUP)
    m = jnp.max(pred, axis=0, keepdims=True)
    e = jnp.exp(pred - m)
    sm = e * pl.reciprocal(jnp.sum(e, axis=0, keepdims=True), approx=True)

    # 1 - one_hot(clamp(gt, 0, C-1)) built directly
    gt_c = jnp.clip(gt, 0, C - 1)
    ch = lax.broadcasted_iota(jnp.int32, (C, H, W), 0)
    inv_gt = (ch != gt_c[None, :, :]).astype(jnp.float32)

    # boundary maps + reductions, ordered to keep the live set small
    gt_b = _maxpool_same(bufh_ref, bufw_ref, inv_gt, THETA0) - inv_gt
    gt_b_ext = _maxpool_same(bufh_ref, bufw_ref, gt_b, THETA)

    inv_pred = 1.0 - sm
    pred_b = _maxpool_same(bufh_ref, bufw_ref, inv_pred, THETA0) - inv_pred

    s_pb_gbe = _sum_hw(pred_b * gt_b_ext)    # (C, 1)
    s_pb = _sum_hw(pred_b)                   # (C, 1)
    s_gb = _sum_hw(gt_b)                     # (C, 1)

    # gt_b_ext / inv_pred are dead here; pred_b_ext reuses the pool scratch
    pred_b_ext = _maxpool_same(bufh_ref, bufw_ref, pred_b, THETA)
    s_pbe_gb = _sum_hw(pred_b_ext * gt_b)    # (C, 1)

    # precision / recall / BF1 per channel (tiny, exact f32 division)
    P = s_pb_gbe / (s_pb + EPS)
    R = s_pbe_gb / (s_gb + EPS)
    BF1 = 2.0 * P * R / (P + R + EPS)

    bf1_ref[0] = BF1


def boundary_loss(pred, gt, theta0=3, theta=5):
    assert theta0 == THETA0 and theta == THETA
    n, c, h, w = pred.shape
    gt = gt.astype(jnp.int32)

    # Scoped-VMEM budget: double-buffered inputs + pool scratch + live f32
    # temporaries (generous headroom), clamped to [32 MiB, 64 MiB] so it is
    # valid on v5e/v6e (128 MiB physical) and v7x (64 MiB physical).
    slab_f32 = c * h * w * 4
    vmem_bytes = (2 * c * h * w * pred.dtype.itemsize   # pred double-buffer
                  + 2 * h * w * 4                        # gt double-buffer
                  + c * (h + 2 * PAD) * w * 4            # H-padded scratch
                  + c * h * (w + 2 * PAD) * 4            # W-padded scratch
                  + 10 * slab_f32                        # live temporaries
                  + (1 << 20))
    vmem_bytes = int(min(max(vmem_bytes, 32 * 1024 * 1024), 64 * 1024 * 1024))

    bf1 = pl.pallas_call(
        boundary_loss_kernel,
        out_shape=jax.ShapeDtypeStruct((n, c, 1), jnp.float32),
        grid_spec=pltpu.PrefetchScalarGridSpec(
            num_scalar_prefetch=0,
            grid=(n,),
            in_specs=[
                pl.BlockSpec((1, c, h, w), lambda i: (i, 0, 0, 0)),
                pl.BlockSpec((1, h, w), lambda i: (i, 0, 0)),
            ],
            out_specs=pl.BlockSpec((1, c, 1), lambda i: (i, 0, 0)),
            scratch_shapes=[
                pltpu.VMEM((c, h + 2 * PAD, w), jnp.float32),   # H-padded
                pltpu.VMEM((c, h, w + 2 * PAD), jnp.float32),   # W-padded
            ],
        ),
        compiler_params=pltpu.CompilerParams(
            dimension_semantics=("parallel",),
            vmem_limit_bytes=vmem_bytes,
        ),
    )(pred, gt)    # pred stays in its native dtype; cast happens in-kernel

    # final tiny reduction over (N, C) — glue, done in plain JAX
    return jnp.mean(1.0 - bf1)


if __name__ == "__main__":
    key = jax.random.PRNGKey(0)
    k1, k2 = jax.random.split(key)
    N, C, H, W = 2, 4, 16, 16
    pred = jax.random.normal(k1, (N, C, H, W), dtype=jnp.float32)
    gt = jax.random.randint(k2, (N, H, W), 0, C, dtype=jnp.int32)

    loss = boundary_loss(pred, gt)
    jax.block_until_ready(loss)
    print("KERNEL_OK")
</pallas_src>

<mosaic_0001>
module attributes {stable_mosaic.version = 11 : i64} {
  func.func @boundary_loss_kernel(%arg0: i32, %arg1: memref<1x4x16x16xf32, #tpu.memory_space<vmem>>, %arg2: memref<1x16x16xi32, #tpu.memory_space<vmem>>, %arg3: memref<1x4x1xf32, #tpu.memory_space<vmem>>, %arg4: memref<4x20x16xf32, #tpu.memory_space<vmem>>, %arg5: memref<4x16x20xf32, #tpu.memory_space<vmem>>) attributes {dimension_semantics = [#tpu.dimension_semantics<parallel>], iteration_bounds = array<i64: 2>, scalar_prefetch = 0 : i64, scratch_operands = 2 : i64, tpu.core_type = #tpu.core_type<tc>, window_params = [{transform_indices = @transform_0, window_bounds = array<i64: 1, 4, 16, 16>}, {transform_indices = @transform_1, window_bounds = array<i64: 1, 16, 16>}, {transform_indices = @transform_2, window_bounds = array<i64: 1, 4, 1>}]} {
    %cst = arith.constant -1.000000e+30 : f32
    %0 = vector.broadcast %cst : f32 to vector<4x2x16xf32>
    %c0 = arith.constant 0 : index
    %c0_0 = arith.constant 0 : index
    %c0_1 = arith.constant 0 : index
    %1 = vector.load %arg4[%c0, %c0_0, %c0_1] : memref<4x20x16xf32, #tpu.memory_space<vmem>>, vector<4x2x16xf32>
    tpu.vector_store %arg4[%c0, %c0_0, %c0_1], %0 {strides = array<i32>} : memref<4x20x16xf32, #tpu.memory_space<vmem>>, vector<4x2x16xf32>,
    %cst_2 = arith.constant -1.000000e+30 : f32
    %2 = vector.broadcast %cst_2 : f32 to vector<4x2x16xf32>
    %c0_3 = arith.constant 0 : index
    %c18 = arith.constant 18 : index
    %c0_4 = arith.constant 0 : index
    %3 = vector.load %arg4[%c0_3, %c18, %c0_4] : memref<4x20x16xf32, #tpu.memory_space<vmem>>, vector<4x2x16xf32>
    tpu.vector_store %arg4[%c0_3, %c18, %c0_4], %2 {strides = array<i32>} : memref<4x20x16xf32, #tpu.memory_space<vmem>>, vector<4x2x16xf32>,
    %cst_5 = arith.constant -1.000000e+30 : f32
    %4 = vector.broadcast %cst_5 : f32 to vector<4x16x2xf32>
    %c0_6 = arith.constant 0 : index
    %c0_7 = arith.constant 0 : index
    %c0_8 = arith.constant 0 : index
    %5 = vector.load %arg5[%c0_6, %c0_7, %c0_8] : memref<4x16x20xf32, #tpu.memory_space<vmem>>, vector<4x16x2xf32>
    tpu.vector_store %arg5[%c0_6, %c0_7, %c0_8], %4 {strides = array<i32>} : memref<4x16x20xf32, #tpu.memory_space<vmem>>, vector<4x16x2xf32>,
    %cst_9 = arith.constant -1.000000e+30 : f32
    %6 = vector.broadcast %cst_9 : f32 to vector<4x16x2xf32>
    %c0_10 = arith.constant 0 : index
    %c0_11 = arith.constant 0 : index
    %c18_12 = arith.constant 18 : index
    %7 = vector.load %arg5[%c0_10, %c0_11, %c18_12] : memref<4x16x20xf32, #tpu.memory_space<vmem>>, vector<4x16x2xf32>
    tpu.vector_store %arg5[%c0_10, %c0_11, %c18_12], %6 {strides = array<i32>} : memref<4x16x20xf32, #tpu.memory_space<vmem>>, vector<4x16x2xf32>,
    %c0_13 = arith.constant 0 : index
    %c0_14 = arith.constant 0 : index
    %c0_15 = arith.constant 0 : index
    %c0_16 = arith.constant 0 : index
    %8 = vector.load %arg1[%c0_13, %c0_14, %c0_15, %c0_16] : memref<1x4x16x16xf32, #tpu.memory_space<vmem>>, vector<1x4x16x16xf32>
    %9 = vector.shape_cast %8 : vector<1x4x16x16xf32> to vector<4x16x16xf32>
    %c0_17 = arith.constant 0 : index
    %c0_18 = arith.constant 0 : index
    %c0_19 = arith.constant 0 : index
    %10 = vector.load %arg2[%c0_17, %c0_18, %c0_19] : memref<1x16x16xi32, #tpu.memory_space<vmem>>, vector<1x16x16xi32>
    %11 = vector.shape_cast %10 : vector<1x16x16xi32> to vector<16x16xi32>
    %cst_20 = arith.constant dense<0xFF800000> : vector<16x16xf32>
    %12 = vector.multi_reduction <maximumf>, %9, %cst_20 [0] : vector<4x16x16xf32> to vector<16x16xf32>
    %13 = vector.shape_cast %12 : vector<16x16xf32> to vector<1x16x16xf32>
    %14 = vector.broadcast %13 : vector<1x16x16xf32> to vector<4x16x16xf32>
    %15 = arith.subf %9, %14 : vector<4x16x16xf32>
    %16 = math.exp %15 : vector<4x16x16xf32>
    %cst_21 = arith.constant dense<0.000000e+00> : vector<16x16xf32>
    %17 = vector.multi_reduction <add>, %16, %cst_21 [0] : vector<4x16x16xf32> to vector<16x16xf32>
    %18 = vector.shape_cast %17 : vector<16x16xf32> to vector<1x16x16xf32>
    %19 = tpu.reciprocal %18 {approx = true} : vector<1x16x16xf32> -> vector<1x16x16xf32>
    %20 = vector.broadcast %19 : vector<1x16x16xf32> to vector<4x16x16xf32>
    %21 = arith.mulf %16, %20 : vector<4x16x16xf32>
    %c0_i32 = arith.constant 0 : i32
    %c3_i32 = arith.constant 3 : i32
    %22 = vector.broadcast %c0_i32 : i32 to vector<16x16xi32>
    %23 = arith.maxsi %22, %11 : vector<16x16xi32>
    %24 = vector.broadcast %c3_i32 : i32 to vector<16x16xi32>
    %25 = arith.minsi %24, %23 : vector<16x16xi32>
    %26 = tpu.iota {dimensions = array<i32: 0>} : vector<4x16x16xi32>
    %27 = vector.shape_cast %25 : vector<16x16xi32> to vector<1x16x16xi32>
    %28 = vector.broadcast %27 : vector<1x16x16xi32> to vector<4x16x16xi32>
    %29 = arith.cmpi ne, %26, %28 : vector<4x16x16xi32>
    %30 = arith.extui %29 : vector<4x16x16xi1> to vector<4x16x16xi32>
    %31 = arith.sitofp %30 : vector<4x16x16xi32> to vector<4x16x16xf32>
    %c0_22 = arith.constant 0 : index
    %c2 = arith.constant 2 : index
    %c0_23 = arith.constant 0 : index
    %32 = vector.load %arg4[%c0_22, %c2, %c0_23] : memref<4x20x16xf32, #tpu.memory_space<vmem>>, vector<4x16x16xf32>
    tpu.vector_store %arg4[%c0_22, %c2, %c0_23], %31 {strides = array<i32>} : memref<4x20x16xf32, #tpu.memory_space<vmem>>, vector<4x16x16xf32>,
    %c0_24 = arith.constant 0 : index
    %c1 = arith.constant 1 : index
    %c0_25 = arith.constant 0 : index
    %33 = vector.load %arg4[%c0_24, %c1, %c0_25] : memref<4x20x16xf32, #tpu.memory_space<vmem>>, vector<4x16x16xf32>
    %c0_26 = arith.constant 0 : index
    %c2_27 = arith.constant 2 : index
    %c0_28 = arith.constant 0 : index
    %34 = vector.load %arg4[%c0_26, %c2_27, %c0_28] : memref<4x20x16xf32, #tpu.memory_space<vmem>>, vector<4x16x16xf32>
    %35 = arith.maximumf %33, %34 : vector<4x16x16xf32>
    %c0_29 = arith.constant 0 : index
    %c3 = arith.constant 3 : index
    %c0_30 = arith.constant 0 : index
    %36 = vector.load %arg4[%c0_29, %c3, %c0_30] : memref<4x20x16xf32, #tpu.memory_space<vmem>>, vector<4x16x16xf32>
    %37 = arith.maximumf %35, %36 : vector<4x16x16xf32>
    %c0_31 = arith.constant 0 : index
    %c0_32 = arith.constant 0 : index
    %c2_33 = arith.constant 2 : index
    %38 = vector.load %arg5[%c0_31, %c0_32, %c2_33] : memref<4x16x20xf32, #tpu.memory_space<vmem>>, vector<4x16x16xf32>
    tpu.vector_store %arg5[%c0_31, %c0_32, %c2_33], %37 {strides = array<i32>} : memref<4x16x20xf32, #tpu.memory_space<vmem>>, vector<4x16x16xf32>,
    %c0_34 = arith.constant 0 : index
    %c0_35 = arith.constant 0 : index
    %c1_36 = arith.constant 1 : index
    %39 = vector.load %arg5[%c0_34, %c0_35, %c1_36] : memref<4x16x20xf32, #tpu.memory_space<vmem>>, vector<4x16x16xf32>
    %c0_37 = arith.constant 0 : index
    %c0_38 = arith.constant 0 : index
    %c2_39 = arith.constant 2 : index
    %40 = vector.load %arg5[%c0_37, %c0_38, %c2_39] : memref<4x16x20xf32, #tpu.memory_space<vmem>>, vector<4x16x16xf32>
    %41 = arith.maximumf %39, %40 : vector<4x16x16xf32>
    %c0_40 = arith.constant 0 : index
    %c0_41 = arith.constant 0 : index
    %c3_42 = arith.constant 3 : index
    %42 = vector.load %arg5[%c0_40, %c0_41, %c3_42] : memref<4x16x20xf32, #tpu.memory_space<vmem>>, vector<4x16x16xf32>
    %43 = arith.maximumf %41, %42 : vector<4x16x16xf32>
    %44 = arith.subf %43, %31 : vector<4x16x16xf32>
    %c0_43 = arith.constant 0 : index
    %c2_44 = arith.constant 2 : index
    %c0_45 = arith.constant 0 : index
    %45 = vector.load %arg4[%c0_43, %c2_44, %c0_45] : memref<4x20x16xf32, #tpu.memory_space<vmem>>, vector<4x16x16xf32>
    tpu.vector_store %arg4[%c0_43, %c2_44, %c0_45], %44 {strides = array<i32>} : memref<4x20x16xf32, #tpu.memory_space<vmem>>, vector<4x16x16xf32>,
    %c0_46 = arith.constant 0 : index
    %c0_47 = arith.constant 0 : index
    %c0_48 = arith.constant 0 : index
    %46 = vector.load %arg4[%c0_46, %c0_47, %c0_48] : memref<4x20x16xf32, #tpu.memory_space<vmem>>, vector<4x16x16xf32>
    %c0_49 = arith.constant 0 : index
    %c1_50 = arith.constant 1 : index
    %c0_51 = arith.constant 0 : index
    %47 = vector.load %arg4[%c0_49, %c1_50, %c0_51] : memref<4x20x16xf32, #tpu.memory_space<vmem>>, vector<4x16x16xf32>
    %48 = arith.maximumf %46, %47 : vector<4x16x16xf32>
    %c0_52 = arith.constant 0 : index
    %c2_53 = arith.constant 2 : index
    %c0_54 = arith.constant 0 : index
    %49 = vector.load %arg4[%c0_52, %c2_53, %c0_54] : memref<4x20x16xf32, #tpu.memory_space<vmem>>, vector<4x16x16xf32>
    %50 = arith.maximumf %48, %49 : vector<4x16x16xf32>
    %c0_55 = arith.constant 0 : index
    %c3_56 = arith.constant 3 : index
    %c0_57 = arith.constant 0 : index
    %51 = vector.load %arg4[%c0_55, %c3_56, %c0_57] : memref<4x20x16xf32, #tpu.memory_space<vmem>>, vector<4x16x16xf32>
    %52 = arith.maximumf %50, %51 : vector<4x16x16xf32>
    %c0_58 = arith.constant 0 : index
    %c4 = arith.constant 4 : index
    %c0_59 = arith.constant 0 : index
    %53 = vector.load %arg4[%c0_58, %c4, %c0_59] : memref<4x20x16xf32, #tpu.memory_space<vmem>>, vector<4x16x16xf32>
    %54 = arith.maximumf %52, %53 : vector<4x16x16xf32>
    %c0_60 = arith.constant 0 : index
    %c0_61 = arith.constant 0 : index
    %c2_62 = arith.constant 2 : index
    %55 = vector.load %arg5[%c0_60, %c0_61, %c2_62] : memref<4x16x20xf32, #tpu.memory_space<vmem>>, vector<4x16x16xf32>
    tpu.vector_store %arg5[%c0_60, %c0_61, %c2_62], %54 {strides = array<i32>} : memref<4x16x20xf32, #tpu.memory_space<vmem>>, vector<4x16x16xf32>,
    %c0_63 = arith.constant 0 : index
    %c0_64 = arith.constant 0 : index
    %c0_65 = arith.constant 0 : index
    %56 = vector.load %arg5[%c0_63, %c0_64, %c0_65] : memref<4x16x20xf32, #tpu.memory_space<vmem>>, vector<4x16x16xf32>
    %c0_66 = arith.constant 0 : index
    %c0_67 = arith.constant 0 : index
    %c1_68 = arith.constant 1 : index
    %57 = vector.load %arg5[%c0_66, %c0_67, %c1_68] : memref<4x16x20xf32, #tpu.memory_space<vmem>>, vector<4x16x16xf32>
    %58 = arith.maximumf %56, %57 : vector<4x16x16xf32>
    %c0_69 = arith.constant 0 : index
    %c0_70 = arith.constant 0 : index
    %c2_71 = arith.constant 2 : index
    %59 = vector.load %arg5[%c0_69, %c0_70, %c2_71] : memref<4x16x20xf32, #tpu.memory_space<vmem>>, vector<4x16x16xf32>
    %60 = arith.maximumf %58, %59 : vector<4x16x16xf32>
    %c0_72 = arith.constant 0 : index
    %c0_73 = arith.constant 0 : index
    %c3_74 = arith.constant 3 : index
    %61 = vector.load %arg5[%c0_72, %c0_73, %c3_74] : memref<4x16x20xf32, #tpu.memory_space<vmem>>, vector<4x16x16xf32>
    %62 = arith.maximumf %60, %61 : vector<4x16x16xf32>
    %c0_75 = arith.constant 0 : index
    %c0_76 = arith.constant 0 : index
    %c4_77 = arith.constant 4 : index
    %63 = vector.load %arg5[%c0_75, %c0_76, %c4_77] : memref<4x16x20xf32, #tpu.memory_space<vmem>>, vector<4x16x16xf32>
    %64 = arith.maximumf %62, %63 : vector<4x16x16xf32>
    %cst_78 = arith.constant 1.000000e+00 : f32
    %65 = vector.broadcast %cst_78 : f32 to vector<4x16x16xf32>
    %66 = arith.subf %65, %21 : vector<4x16x16xf32>
    %c0_79 = arith.constant 0 : index
    %c2_80 = arith.constant 2 : index
    %c0_81 = arith.constant 0 : index
    %67 = vector.load %arg4[%c0_79, %c2_80, %c0_81] : memref<4x20x16xf32, #tpu.memory_space<vmem>>, vector<4x16x16xf32>
    tpu.vector_store %arg4[%c0_79, %c2_80, %c0_81], %66 {strides = array<i32>} : memref<4x20x16xf32, #tpu.memory_space<vmem>>, vector<4x16x16xf32>,
    %c0_82 = arith.constant 0 : index
    %c1_83 = arith.constant 1 : index
    %c0_84 = arith.constant 0 : index
    %68 = vector.load %arg4[%c0_82, %c1_83, %c0_84] : memref<4x20x16xf32, #tpu.memory_space<vmem>>, vector<4x16x16xf32>
    %c0_85 = arith.constant 0 : index
    %c2_86 = arith.constant 2 : index
    %c0_87 = arith.constant 0 : index
    %69 = vector.load %arg4[%c0_85, %c2_86, %c0_87] : memref<4x20x16xf32, #tpu.memory_space<vmem>>, vector<4x16x16xf32>
    %70 = arith.maximumf %68, %69 : vector<4x16x16xf32>
    %c0_88 = arith.constant 0 : index
    %c3_89 = arith.constant 3 : index
    %c0_90 = arith.constant 0 : index
    %71 = vector.load %arg4[%c0_88, %c3_89, %c0_90] : memref<4x20x16xf32, #tpu.memory_space<vmem>>, vector<4x16x16xf32>
    %72 = arith.maximumf %70, %71 : vector<4x16x16xf32>
    %c0_91 = arith.constant 0 : index
    %c0_92 = arith.constant 0 : index
    %c2_93 = arith.constant 2 : index
    %73 = vector.load %arg5[%c0_91, %c0_92, %c2_93] : memref<4x16x20xf32, #tpu.memory_space<vmem>>, vector<4x16x16xf32>
    tpu.vector_store %arg5[%c0_91, %c0_92, %c2_93], %72 {strides = array<i32>} : memref<4x16x20xf32, #tpu.memory_space<vmem>>, vector<4x16x16xf32>,
    %c0_94 = arith.constant 0 : index
    %c0_95 = arith.constant 0 : index
    %c1_96 = arith.constant 1 : index
    %74 = vector.load %arg5[%c0_94, %c0_95, %c1_96] : memref<4x16x20xf32, #tpu.memory_space<vmem>>, vector<4x16x16xf32>
    %c0_97 = arith.constant 0 : index
    %c0_98 = arith.constant 0 : index
    %c2_99 = arith.constant 2 : index
    %75 = vector.load %arg5[%c0_97, %c0_98, %c2_99] : memref<4x16x20xf32, #tpu.memory_space<vmem>>, vector<4x16x16xf32>
    %76 = arith.maximumf %74, %75 : vector<4x16x16xf32>
    %c0_100 = arith.constant 0 : index
    %c0_101 = arith.constant 0 : index
    %c3_102 = arith.constant 3 : index
    %77 = vector.load %arg5[%c0_100, %c0_101, %c3_102] : memref<4x16x20xf32, #tpu.memory_space<vmem>>, vector<4x16x16xf32>
    %78 = arith.maximumf %76, %77 : vector<4x16x16xf32>
    %79 = arith.subf %78, %66 : vector<4x16x16xf32>
    %80 = arith.mulf %79, %64 : vector<4x16x16xf32>
    %cst_103 = arith.constant dense<0.000000e+00> : vector<4x16xf32>
    %81 = vector.multi_reduction <add>, %80, %cst_103 [2] : vector<4x16x16xf32> to vector<4x16xf32>
    %cst_104 = arith.constant dense<0.000000e+00> : vector<4xf32>
    %82 = vector.multi_reduction <add>, %81, %cst_104 [1] : vector<4x16xf32> to vector<4xf32>
    %83 = vector.shape_cast %82 : vector<4xf32> to vector<4x1xf32>
    %cst_105 = arith.constant dense<0.000000e+00> : vector<4x16xf32>
    %84 = vector.multi_reduction <add>, %79, %cst_105 [2] : vector<4x16x16xf32> to vector<4x16xf32>
    %cst_106 = arith.constant dense<0.000000e+00> : vector<4xf32>
    %85 = vector.multi_reduction <add>, %84, %cst_106 [1] : vector<4x16xf32> to vector<4xf32>
    %86 = vector.shape_cast %85 : vector<4xf32> to vector<4x1xf32>
    %cst_107 = arith.constant dense<0.000000e+00> : vector<4x16xf32>
    %87 = vector.multi_reduction <add>, %44, %cst_107 [2] : vector<4x16x16xf32> to vector<4x16xf32>
    %cst_108 = arith.constant dense<0.000000e+00> : vector<4xf32>
    %88 = vector.multi_reduction <add>, %87, %cst_108 [1] : vector<4x16xf32> to vector<4xf32>
    %89 = vector.shape_cast %88 : vector<4xf32> to vector<4x1xf32>
    %c0_109 = arith.constant 0 : index
    %c2_110 = arith.constant 2 : index
    %c0_111 = arith.constant 0 : index
    %90 = vector.load %arg4[%c0_109, %c2_110, %c0_111] : memref<4x20x16xf32, #tpu.memory_space<vmem>>, vector<4x16x16xf32>
    tpu.vector_store %arg4[%c0_109, %c2_110, %c0_111], %79 {strides = array<i32>} : memref<4x20x16xf32, #tpu.memory_space<vmem>>, vector<4x16x16xf32>,
    %c0_112 = arith.constant 0 : index
    %c0_113 = arith.constant 0 : index
    %c0_114 = arith.constant 0 : index
    %91 = vector.load %arg4[%c0_112, %c0_113, %c0_114] : memref<4x20x16xf32, #tpu.memory_space<vmem>>, vector<4x16x16xf32>
    %c0_115 = arith.constant 0 : index
    %c1_116 = arith.constant 1 : index
    %c0_117 = arith.constant 0 : index
    %92 = vector.load %arg4[%c0_115, %c1_116, %c0_117] : memref<4x20x16xf32, #tpu.memory_space<vmem>>, vector<4x16x16xf32>
    %93 = arith.maximumf %91, %92 : vector<4x16x16xf32>
    %c0_118 = arith.constant 0 : index
    %c2_119 = arith.constant 2 : index
    %c0_120 = arith.constant 0 : index
    %94 = vector.load %arg4[%c0_118, %c2_119, %c0_120] : memref<4x20x16xf32, #tpu.memory_space<vmem>>, vector<4x16x16xf32>
    %95 = arith.maximumf %93, %94 : vector<4x16x16xf32>
    %c0_121 = arith.constant 0 : index
    %c3_122 = arith.constant 3 : index
    %c0_123 = arith.constant 0 : index
    %96 = vector.load %arg4[%c0_121, %c3_122, %c0_123] : memref<4x20x16xf32, #tpu.memory_space<vmem>>, vector<4x16x16xf32>
    %97 = arith.maximumf %95, %96 : vector<4x16x16xf32>
    %c0_124 = arith.constant 0 : index
    %c4_125 = arith.constant 4 : index
    %c0_126 = arith.constant 0 : index
    %98 = vector.load %arg4[%c0_124, %c4_125, %c0_126] : memref<4x20x16xf32, #tpu.memory_space<vmem>>, vector<4x16x16xf32>
    %99 = arith.maximumf %97, %98 : vector<4x16x16xf32>
    %c0_127 = arith.constant 0 : index
    %c0_128 = arith.constant 0 : index
    %c2_129 = arith.constant 2 : index
    %100 = vector.load %arg5[%c0_127, %c0_128, %c2_129] : memref<4x16x20xf32, #tpu.memory_space<vmem>>, vector<4x16x16xf32>
    tpu.vector_store %arg5[%c0_127, %c0_128, %c2_129], %99 {strides = array<i32>} : memref<4x16x20xf32, #tpu.memory_space<vmem>>, vector<4x16x16xf32>,
    %c0_130 = arith.constant 0 : index
    %c0_131 = arith.constant 0 : index
    %c0_132 = arith.constant 0 : index
    %101 = vector.load %arg5[%c0_130, %c0_131, %c0_132] : memref<4x16x20xf32, #tpu.memory_space<vmem>>, vector<4x16x16xf32>
    %c0_133 = arith.constant 0 : index
    %c0_134 = arith.constant 0 : index
    %c1_135 = arith.constant 1 : index
    %102 = vector.load %arg5[%c0_133, %c0_134, %c1_135] : memref<4x16x20xf32, #tpu.memory_space<vmem>>, vector<4x16x16xf32>
    %103 = arith.maximumf %101, %102 : vector<4x16x16xf32>
    %c0_136 = arith.constant 0 : index
    %c0_137 = arith.constant 0 : index
    %c2_138 = arith.constant 2 : index
    %104 = vector.load %arg5[%c0_136, %c0_137, %c2_138] : memref<4x16x20xf32, #tpu.memory_space<vmem>>, vector<4x16x16xf32>
    %105 = arith.maximumf %103, %104 : vector<4x16x16xf32>
    %c0_139 = arith.constant 0 : index
    %c0_140 = arith.constant 0 : index
    %c3_141 = arith.constant 3 : index
    %106 = vector.load %arg5[%c0_139, %c0_140, %c3_141] : memref<4x16x20xf32, #tpu.memory_space<vmem>>, vector<4x16x16xf32>
    %107 = arith.maximumf %105, %106 : vector<4x16x16xf32>
    %c0_142 = arith.constant 0 : index
    %c0_143 = arith.constant 0 : index
    %c4_144 = arith.constant 4 : index
    %108 = vector.load %arg5[%c0_142, %c0_143, %c4_144] : memref<4x16x20xf32, #tpu.memory_space<vmem>>, vector<4x16x16xf32>
    %109 = arith.maximumf %107, %108 : vector<4x16x16xf32>
    %110 = arith.mulf %109, %44 : vector<4x16x16xf32>
    %cst_145 = arith.constant dense<0.000000e+00> : vector<4x16xf32>
    %111 = vector.multi_reduction <add>, %110, %cst_145 [2] : vector<4x16x16xf32> to vector<4x16xf32>
    %cst_146 = arith.constant dense<0.000000e+00> : vector<4xf32>
    %112 = vector.multi_reduction <add>, %111, %cst_146 [1] : vector<4x16xf32> to vector<4xf32>
    %113 = vector.shape_cast %112 : vector<4xf32> to vector<4x1xf32>
    %cst_147 = arith.constant 1.000000e-07 : f32
    %114 = vector.broadcast %cst_147 : f32 to vector<4x1xf32>
    %115 = arith.addf %86, %114 : vector<4x1xf32>
    %116 = arith.divf %83, %115 : vector<4x1xf32>
    %cst_148 = arith.constant 1.000000e-07 : f32
    %117 = vector.broadcast %cst_148 : f32 to vector<4x1xf32>
    %118 = arith.addf %89, %117 : vector<4x1xf32>
    %119 = arith.divf %113, %118 : vector<4x1xf32>
    %cst_149 = arith.constant 2.000000e+00 : f32
    %120 = vector.broadcast %cst_149 : f32 to vector<4x1xf32>
    %121 = arith.mulf %120, %116 : vector<4x1xf32>
    %122 = arith.mulf %121, %119 : vector<4x1xf32>
    %123 = arith.addf %116, %119 : vector<4x1xf32>
    %cst_150 = arith.constant 1.000000e-07 : f32
    %124 = vector.broadcast %cst_150 : f32 to vector<4x1xf32>
    %125 = arith.addf %123, %124 : vector<4x1xf32>
    %126 = arith.divf %122, %125 : vector<4x1xf32>
    %c0_151 = arith.constant 0 : index
    %c0_152 = arith.constant 0 : index
    %c0_153 = arith.constant 0 : index
    %127 = vector.load %arg3[%c0_151, %c0_152, %c0_153] : memref<1x4x1xf32, #tpu.memory_space<vmem>>, vector<1x4x1xf32>
    %128 = vector.shape_cast %127 : vector<1x4x1xf32> to vector<4x1xf32>
    %129 = vector.shape_cast %126 : vector<4x1xf32> to vector<1x4x1xf32>
    tpu.vector_store %arg3[%c0_151, %c0_152, %c0_153], %129 {strides = array<i32>} : memref<1x4x1xf32, #tpu.memory_space<vmem>>, vector<1x4x1xf32>,
    return
  }
  func.func @transform_0(%arg0: i32) -> (i32, i32, i32, i32) {
    %c0_i32 = arith.constant 0 : i32
    %c0_i32_0 = arith.constant 0 : i32
    %c0_i32_1 = arith.constant 0 : i32
    %c0_i32_2 = arith.constant 0 : i32
    return %arg0, %c0_i32, %c0_i32_0, %c0_i32_1 : i32, i32, i32, i32
  }
  func.func @transform_1(%arg0: i32) -> (i32, i32, i32) {
    %c0_i32 = arith.constant 0 : i32
    %c0_i32_0 = arith.constant 0 : i32
    %c0_i32_1 = arith.constant 0 : i32
    return %arg0, %c0_i32, %c0_i32_0 : i32, i32, i32
  }
  func.func @transform_2(%arg0: i32) -> (i32, i32, i32) {
    %c0_i32 = arith.constant 0 : i32
    %c0_i32_0 = arith.constant 0 : i32
    %c0_i32_1 = arith.constant 0 : i32
    return %arg0, %c0_i32, %c0_i32_0 : i32, i32, i32
  }
}

</mosaic_0001>

<llo_original>
// kernel: tpu_custom_call.1
$region0: #{tpu_custom_call.1}
  #allocation0 [shape = 'u32[]', space=smem, size = 0x4, offset = 0x4, fixed_abs, tag = 'smem constant byte address 0x4 - core index']
  #allocation1 [shape = 'u32[72,128]{1,0:T(1,128)}', space=vmem, size = 0x9000, scoped, tag = 'internal scratch']
  #allocation2 [shape = 'f32[4,20,16]{2,1,0:T(8,128)}', space=vmem, size = 0xc000, scoped, tag = 'scratch operand']
  #allocation3 [shape = 'f32[4,16,20]{2,1,0:T(8,128)}', space=vmem, size = 0x8000, scoped, tag = 'scratch operand']
  %s0 = inlined_call_operand.hbm [shape: f32[2,4,16,16], index: 0, kind: input, shape index: {}]
  %s1 = inlined_call_operand.hbm [shape: s32[2,16,16], index: 1, kind: input, shape index: {}]
  %s2 = inlined_call_operand.vmem [shape: f32[2,4,1], index: 2, kind: output, shape index: {}]
  %s3 = sld [smem:[#allocation0]]
  $region49: #{tpu_custom_call.1} parent=0
    _
  %s5 = ssub.s32 1, %s3
  %s6 = scalar_select 0, %s5, %s3
  $region1: #{tpu_custom_call.1} parent=0
    #allocation4 [shape = 'u8[65536]{0}', space=vmem, size = 0x10000, scoped, tag = 'input window, operand 0']
    #allocation5 [shape = 's32[2]{0}', space=sflag, size = 0x8, scoped, tag = 'scoped memory for tpu_custom_call.1']
    #allocation6 [shape = 'u8[16384]{0}', space=vmem, size = 0x4000, scoped, tag = 'input window, operand 1']
    #allocation7 [shape = 's32[2]{0}', space=sflag, size = 0x8, scoped, tag = 'scoped memory for tpu_custom_call.1']
    %7 = vsyncpa [#allocation5], 0
    %s8 = scalar_lea.sflag [#allocation5], 1
    %9 = vsyncpa %s8, 0
    %10 = vsyncpa [#allocation7], 0
    %s11 = scalar_lea.sflag [#allocation7], 1
    %12 = vsyncpa %s11, 0
    loop: start=0, step=1, limit=4
    $region2: #{tpu_custom_call.1} parent=1 // loop_pre_header
      _
    $region3: #{tpu_custom_call.1} parent=1 // loop_header
      %s14 = sphi 0, %s18
      %p15 = scmp.ge.s32.totalorder %s14, 4
      %s24 = sphi 0, %s26
      %s27 = sphi 0, %s24
      %s28 = sphi 0, %s27
      %s44 = sphi 0, %s28
      %s50 = sphi 0, %s52
      %s53 = sphi 0, %s50
      %s54 = sphi 0, %s53
      %s70 = sphi 0, %s54
      %s76 = sphi 0, %s78
      %s79 = sphi 0, %s76
      %s80 = sphi 0, %s79
      %s96 = sphi 0, %s80
    $region4: #{tpu_custom_call.1} parent=1 // loop_header_branch
      %17 = sbr.rel (%p15) target = $region8
    $region5: #{tpu_custom_call.1} parent=1 // loop_body
      %s19 = ssub.s32 %s14, 1
      %s20 = ssub.s32 %s14, 2
      %s21 = sadd.s32 %s14, 1
      %s22 = ssub.s32 %s14, %s21
      %p23 = scmp.eq.s32.totalorder %s22, 0
      %s25 = sadd.s32 %s24, 1
      %s26 = scalar_select %p23, %s24, %s25
      %p29 = pneg %p23
      %p30 = scmp.eq.s32.totalorder %s14, 1
      %p31 = por %p29, %p30
      %p32 = scmp.ne.s32.totalorder %s24, %s27
      %p33 = scmp.eq.s32.totalorder %s14, 0
      %p34 = por %p32, %p33
      %p35 = scmp.ne.s32.totalorder %s24, %s27
      %p36 = scmp.eq.s32.totalorder %s19, 1
      %p37 = por %p35, %p36
      %p38 = scmp.ne.s32.totalorder %s27, %s28
      %p39 = scmp.eq.s32.totalorder %s19, 0
      %p40 = por %p38, %p39
      %p41 = scmp.ne.s32.totalorder %s27, %s28
      %p42 = scmp.eq.s32.totalorder %s20, 1
      %p43 = por %p41, %p42
      %p45 = scmp.ne.s32.totalorder %s28, %s44
      %p46 = scmp.eq.s32.totalorder %s20, 0
      %p47 = por %p45, %p46
      %s48 = ssub.s32 %s14, %s21
      %p49 = scmp.eq.s32.totalorder %s48, 0
      %s51 = sadd.s32 %s50, 1
      %s52 = scalar_select %p49, %s50, %s51
      %p55 = pneg %p49
      %p56 = scmp.eq.s32.totalorder %s14, 1
      %p57 = por %p55, %p56
      %p58 = scmp.ne.s32.totalorder %s50, %s53
      %p59 = scmp.eq.s32.totalorder %s14, 0
      %p60 = por %p58, %p59
      %p61 = scmp.ne.s32.totalorder %s50, %s53
      %p62 = scmp.eq.s32.totalorder %s19, 1
      %p63 = por %p61, %p62
      %p64 = scmp.ne.s32.totalorder %s53, %s54
      %p65 = scmp.eq.s32.totalorder %s19, 0
      %p66 = por %p64, %p65
      %p67 = scmp.ne.s32.totalorder %s53, %s54
      %p68 = scmp.eq.s32.totalorder %s20, 1
      %p69 = por %p67, %p68
      %p71 = scmp.ne.s32.totalorder %s54, %s70
      %p72 = scmp.eq.s32.totalorder %s20, 0
      %p73 = por %p71, %p72
      %s74 = ssub.s32 %s14, %s21
      %p75 = scmp.eq.s32.totalorder %s74, 0
      %s77 = sadd.s32 %s76, 1
      %s78 = scalar_select %p75, %s76, %s77
      %p81 = pneg %p75
      %p82 = scmp.eq.s32.totalorder %s14, 1
      %p83 = por %p81, %p82
      %p84 = scmp.ne.s32.totalorder %s76, %s79
      %p85 = scmp.eq.s32.totalorder %s14, 0
      %p86 = por %p84, %p85
      %p87 = scmp.ne.s32.totalorder %s76, %s79
      %p88 = scmp.eq.s32.totalorder %s19, 1
      %p89 = por %p87, %p88
      %p90 = scmp.ne.s32.totalorder %s79, %s80
      %p91 = scmp.eq.s32.totalorder %s19, 0
      %p92 = por %p90, %p91
      %p93 = scmp.ne.s32.totalorder %s79, %s80
      %p94 = scmp.eq.s32.totalorder %s20, 1
      %p95 = por %p93, %p94
      %p97 = scmp.ne.s32.totalorder %s80, %s96
      %p98 = scmp.eq.s32.totalorder %s20, 0
      %p99 = por %p97, %p98
      %p100 = scmp.le.s32.totalorder 1, %s14
      %p101 = scmp.lt.s32.totalorder %s14, 3
      %p102 = pnand %p100, %p101
      %p103 = pneg %p102
      // Predicated region
      $region9: #{tpu_custom_call.1} parent=5 // pred_check
        _
      $region10: #{tpu_custom_call.1} parent=5 // pred_check_branch
        %105 = sbr.rel (%p102) target = $region12
      $region11: #{tpu_custom_call.1} parent=5 // pred_region
        %s106 = ssub.s32 %s14, 1
      $region12: #{tpu_custom_call.1} parent=5 // pred_fallthru
        _
      %p107 = scmp.lt.s32.totalorder %s14, 2
      // Predicated region
      $region13: #{tpu_custom_call.1} parent=5 // pred_check
        %p108 = pneg %p107
      $region14: #{tpu_custom_call.1} parent=5 // pred_check_branch
        %110 = sbr.rel (%p108) target = $region16
      $region15: #{tpu_custom_call.1} parent=5 // pred_region
        // Predicated region
        $region17: #{tpu_custom_call.1} parent=15 // pred_check
          %p111 = pneg %p34
        $region18: #{tpu_custom_call.1} parent=15 // pred_check_branch
          %113 = sbr.rel (%p111) target = $region20
        $region19: #{tpu_custom_call.1} parent=15 // pred_region
          %s114 = sand.u32 %s24, 1
          %s115 = scalar_lea.sflag [#allocation5], %s114
          %s116 = sand.u32 %s24, 1
          %s117 = smul.addr %s116, 64
          %s118 = scalar_lea.vmem [#allocation4], %s117
          %120 = vsyncadd %s115, 0
          %s121 = smul.addr %s14, 8
          %s122 = smul.addr %s121, 8
          %s123 = scalar_lea.hbm %s0, %s122
          %s124 = sshll.u32 %s123, 4
          %s125 = int_to_ptr.hbm [resolvable:$true] %s124
          %s126 = sshll.u32 %s118, 4
          %s127 = int_to_ptr.vmem [resolvable:$true] %s126
          %132 = dma.hbm_to_vmem [thread:$0]  %s125, 1024, %s127, %s115, 128, 128, 8
        $region20: #{tpu_custom_call.1} parent=15 // pred_fallthru
          _
        // Predicated region
        $region21: #{tpu_custom_call.1} parent=15 // pred_check
          %p133 = pneg %p60
        $region22: #{tpu_custom_call.1} parent=15 // pred_check_branch
          %135 = sbr.rel (%p133) target = $region24
        $region23: #{tpu_custom_call.1} parent=15 // pred_region
          %s136 = sand.u32 %s50, 1
          %s137 = scalar_lea.sflag [#allocation7], %s136
          %s138 = sand.u32 %s50, 1
          %s139 = smul.addr %s138, 16
          %s140 = scalar_lea.vmem [#allocation6], %s139
          %142 = vsyncadd %s137, 0
          %s143 = smul.addr %s14, 2
          %s144 = smul.addr %s143, 8
          %s145 = scalar_lea.hbm %s1, %s144
          %s146 = sshll.u32 %s145, 4
          %s147 = int_to_ptr.hbm [resolvable:$true] %s146
          %s148 = sshll.u32 %s140, 4
          %s149 = int_to_ptr.vmem [resolvable:$true] %s148
          %154 = dma.hbm_to_vmem [thread:$0]  %s147, 256, %s149, %s137, 128, 128, 8
        $region24: #{tpu_custom_call.1} parent=15 // pred_fallthru
          _
      $region16: #{tpu_custom_call.1} parent=5 // pred_fallthru
        _
      %p155 = scmp.le.s32.totalorder 1, %s14
      %p156 = scmp.lt.s32.totalorder %s14, 3
      %p157 = pnand %p155, %p156
      %p158 = pneg %p157
      // Predicated region
      $region25: #{tpu_custom_call.1} parent=5 // pred_check
        _
      $region26: #{tpu_custom_call.1} parent=5 // pred_check_branch
        %160 = sbr.rel (%p157) target = $region28
      $region27: #{tpu_custom_call.1} parent=5 // pred_region
        %s161 = ssub.s32 %s14, 1
        %s162 = sand.u32 %s27, 1
        %s163 = scalar_lea.sflag [#allocation5], %s162
        %s164 = sand.u32 %s27, 1
        %s165 = smul.addr %s164, 64
        %s166 = scalar_lea.vmem [#allocation4], %s165
        // Predicated region
        $region29: #{tpu_custom_call.1} parent=27 // pred_check
          %p167 = pneg %p40
        $region30: #{tpu_custom_call.1} parent=27 // pred_check_branch
          %169 = sbr.rel (%p167) target = $region32
        $region31: #{tpu_custom_call.1} parent=27 // pred_region
          %171 = dma.done %s163, 1024
        $region32: #{tpu_custom_call.1} parent=27 // pred_fallthru
          _
        %s172 = sand.u32 %s53, 1
        %s173 = scalar_lea.sflag [#allocation7], %s172
        %s174 = sand.u32 %s53, 1
        %s175 = smul.addr %s174, 16
        %s176 = scalar_lea.vmem [#allocation6], %s175
        // Predicated region
        $region33: #{tpu_custom_call.1} parent=27 // pred_check
          %p177 = pneg %p66
        $region34: #{tpu_custom_call.1} parent=27 // pred_check_branch
          %179 = sbr.rel (%p177) target = $region36
        $region35: #{tpu_custom_call.1} parent=27 // pred_region
          %181 = dma.done %s173, 256
        $region36: #{tpu_custom_call.1} parent=27 // pred_fallthru
          _
        %s182 = sand.u32 %s27, 1
        %s183 = scalar_lea.sflag [#allocation5], %s182
        %s184 = sand.u32 %s27, 1
        %s185 = smul.addr %s184, 64
        %s186 = scalar_lea.vmem [#allocation4], %s185
        %p187 = pneg %p40
        %p188 = pneg %p37
        %s189 = sand.u32 %s53, 1
        %s190 = scalar_lea.sflag [#allocation7], %s189
        %s191 = sand.u32 %s53, 1
        %s192 = smul.addr %s191, 16
        %s193 = scalar_lea.vmem [#allocation6], %s192
        %p194 = pneg %p66
        %p195 = pneg %p63
        %p196 = pneg %p92
        %p197 = pneg %p89
        %p198 = scmp.lt.s32.totalorder %s19, 1
        %s199 = scalar_select %p198, %s19, 1
        %s200 = smul.addr %s199, 4
        %s201 = scalar_lea.vmem %s2, %s200
        %p202 = scmp.lt.s32.totalorder %s19, 1
        %s203 = scalar_select %p202, %s19, 1
        %s204 = smul.addr %s203, 4
        %s205 = scalar_lea.vmem %s2, %s204
        %vm206 = vcmask 123904
        %207 = vst.msk [vmem:[#allocation2] sm:$0x3] %vm206, -1e+30
        %208 = vst.msk [vmem:[#allocation2 + $0x18] sm:$0x3] %vm206, -1e+30
        %209 = vst.msk [vmem:[#allocation2 + $0x30] sm:$0x3] %vm206, -1e+30
        %210 = vst.msk [vmem:[#allocation2 + $0x48] sm:$0x3] %vm206, -1e+30
        %211 = vst.msk [vmem:[#allocation2 + $0x12] sm:$0x3] %vm206, -1e+30
        %212 = vst.msk [vmem:[#allocation2 + $0x2a] sm:$0x3] %vm206, -1e+30
        %213 = vst.msk [vmem:[#allocation2 + $0x42] sm:$0x3] %vm206, -1e+30
        %214 = vst.msk [vmem:[#allocation2 + $0x5a] sm:$0x3] %vm206, -1e+30
        %vm215 = vcmask 15360
        %216 = vst.msk [vmem:[#allocation3] sm:$0xff] %vm215, -1e+30
        %217 = vst.msk [vmem:[#allocation3 + $0x8] sm:$0xff] %vm215, -1e+30
        %218 = vst.msk [vmem:[#allocation3 + $0x10] sm:$0xff] %vm215, -1e+30
        %219 = vst.msk [vmem:[#allocation3 + $0x18] sm:$0xff] %vm215, -1e+30
        %220 = vst.msk [vmem:[#allocation3 + $0x20] sm:$0xff] %vm215, -1e+30
        %221 = vst.msk [vmem:[#allocation3 + $0x28] sm:$0xff] %vm215, -1e+30
        %222 = vst.msk [vmem:[#allocation3 + $0x30] sm:$0xff] %vm215, -1e+30
        %223 = vst.msk [vmem:[#allocation3 + $0x38] sm:$0xff] %vm215, -1e+30
        %vm224 = vcmask 162960
        %225 = vst.msk [vmem:[#allocation3] sm:$0xff] %vm224, -1e+30
        %226 = vst.msk [vmem:[#allocation3 + $0x8] sm:$0xff] %vm224, -1e+30
        %227 = vst.msk [vmem:[#allocation3 + $0x10] sm:$0xff] %vm224, -1e+30
        %228 = vst.msk [vmem:[#allocation3 + $0x18] sm:$0xff] %vm224, -1e+30
        %229 = vst.msk [vmem:[#allocation3 + $0x20] sm:$0xff] %vm224, -1e+30
        %230 = vst.msk [vmem:[#allocation3 + $0x28] sm:$0xff] %vm224, -1e+30
        %231 = vst.msk [vmem:[#allocation3 + $0x30] sm:$0xff] %vm224, -1e+30
        %232 = vst.msk [vmem:[#allocation3 + $0x38] sm:$0xff] %vm224, -1e+30
        %v233 = vld [vmem:[%s166] sm:$0xff]
        %v234 = vld [vmem:[%s166 + $0x8] sm:$0xff]
        %v235 = vld [vmem:[%s166 + $0x10] sm:$0xff]
        %v236 = vld [vmem:[%s166 + $0x18] sm:$0xff]
        %v237 = vld [vmem:[%s166 + $0x20] sm:$0xff]
        %v238 = vld [vmem:[%s166 + $0x28] sm:$0xff]
        %v239 = vld [vmem:[%s166 + $0x30] sm:$0xff]
        %v240 = vld [vmem:[%s166 + $0x38] sm:$0xff]
        %v241 = vld [vmem:[%s176] sm:$0xff]
        %v242 = vld [vmem:[%s176 + $0x8] sm:$0xff]
        %vm243 = vcmask 130048
        %v244 = vsel %vm243, %v233, -inf
        %v245 = vsel %vm243, %v235, -inf
        %v246 = vsel %vm243, %v237, -inf
        %v247 = vmax.f32 %v244, %v246
        %v248 = vsel %vm243, %v239, -inf
        %v249 = vmax.f32 %v245, %v248
        %v250 = vmax.f32 %v247, %v249
        %v251 = vsel %vm243, %v234, -inf
        %v252 = vsel %vm243, %v236, -inf
        %v253 = vsel %vm243, %v238, -inf
        %v254 = vmax.f32 %v251, %v253
        %v255 = vsel %vm243, %v240, -inf
        %v256 = vmax.f32 %v252, %v255
        %v257 = vmax.f32 %v254, %v256
        %v258 = vsub.f32 %v233, %v250
        %v259 = vsub.f32 %v234, %v257
        %v260 = vsub.f32 %v235, %v250
        %v261 = vsub.f32 %v236, %v257
        %v262 = vsub.f32 %v237, %v250
        %v263 = vsub.f32 %v238, %v257
        %v264 = vsub.f32 %v239, %v250
        %v265 = vsub.f32 %v240, %v257
        %v266 = vmul.f32 %v258, 1.442695
        %v267 = vpow.pop %v266
        %v268 = vmul.f32 %v259, 1.442695
        %v269 = vpow.pop %v268
        %v270 = vmul.f32 %v260, 1.442695
        %v271 = vpow.pop %v270
        %v272 = vmul.f32 %v261, 1.442695
        %v273 = vpow.pop %v272
        %v274 = vmul.f32 %v262, 1.442695
        %v275 = vpow.pop %v274
        %v276 = vmul.f32 %v263, 1.442695
        %v277 = vpow.pop %v276
        %v278 = vmul.f32 %v264, 1.442695
        %v279 = vpow.pop %v278
        %v280 = vmul.f32 %v265, 1.442695
        %v281 = vpow.pop %v280
        %v282 = vsel %vm243, %v267, 0.0
        %v283 = vsel %vm243, %v271, 0.0
        %v284 = vadd.f32 %v282, %v283
        %v285 = vsel %vm243, %v275, 0.0
        %v286 = vadd.f32 %v284, %v285
        %v287 = vsel %vm243, %v279, 0.0
        %v288 = vadd.f32 %v286, %v287
        %v289 = vsel %vm243, %v269, 0.0
        %v290 = vsel %vm243, %v273, 0.0
        %v291 = vadd.f32 %v289, %v290
        %v292 = vsel %vm243, %v277, 0.0
        %v293 = vadd.f32 %v291, %v292
        %v294 = vsel %vm243, %v281, 0.0
        %v295 = vadd.f32 %v293, %v294
        %v296 = vrcp.pop %v288
        %v297 = vrcp.pop %v295
        %v298 = vmul.f32 %v267, %v296
        %v299 = vmul.f32 %v269, %v297
        %v300 = vmul.f32 %v271, %v296
        %v301 = vmul.f32 %v273, %v297
        %v302 = vmul.f32 %v275, %v296
        %v303 = vmul.f32 %v277, %v297
        %v304 = vmul.f32 %v279, %v296
        %v305 = vmul.f32 %v281, %v297
        %vm306 = vcmp.gt.s32.totalorder %v241, 0
        %v307 = vsel %vm306, %v241, 0
        %vm308 = vcmp.gt.s32.totalorder %v242, 0
        %v309 = vsel %vm308, %v242, 0
        %vm310 = vcmp.lt.s32.totalorder %v307, 3
        %v311 = vsel %vm310, %v307, 3
        %vm312 = vcmp.lt.s32.totalorder %v309, 3
        %v313 = vsel %vm312, %v309, 3
        %vm314 = vcmp.ne.s32.totalorder %v311, 0
        %vm315 = vcmp.ne.s32.totalorder %v313, 0
        %vm316 = vcmp.ne.s32.totalorder %v311, 1
        %vm317 = vcmp.ne.s32.totalorder %v313, 1
        %vm318 = vcmp.ne.s32.totalorder %v311, 2
        %vm319 = vcmp.ne.s32.totalorder %v313, 2
        %vm320 = vcmp.ne.s32.totalorder %v311, 3
        %vm321 = vcmp.ne.s32.totalorder %v313, 3
        %v322 = vsel %vm314, 1, 0
        %v323 = vsel %vm315, 1, 0
        %v324 = vsel %vm316, 1, 0
        %v325 = vsel %vm317, 1, 0
        %v326 = vsel %vm318, 1, 0
        %v327 = vsel %vm319, 1, 0
        %v328 = vsel %vm320, 1, 0
        %v329 = vsel %vm321, 1, 0
        %v330 = vcvt.s32.f32 %v322
        %v331 = vcvt.s32.f32 %v323
        %v332 = vcvt.s32.f32 %v324
        %v333 = vcvt.s32.f32 %v325
        %v334 = vcvt.s32.f32 %v326
        %v335 = vcvt.s32.f32 %v327
        %v336 = vcvt.s32.f32 %v328
        %v337 = vcvt.s32.f32 %v329
        %338 = vst.msk [vmem:[#allocation2 + $0x2] sm:$0xff] %vm243, %v330
        %339 = vst.msk [vmem:[#allocation2 + $0xa] sm:$0xff] %vm243, %v331
        %340 = vst.msk [vmem:[#allocation2 + $0x1a] sm:$0xff] %vm243, %v332
        %341 = vst.msk [vmem:[#allocation2 + $0x22] sm:$0xff] %vm243, %v333
        %342 = vst.msk [vmem:[#allocation2 + $0x32] sm:$0xff] %vm243, %v334
        %343 = vst.msk [vmem:[#allocation2 + $0x3a] sm:$0xff] %vm243, %v335
        %344 = vst.msk [vmem:[#allocation2 + $0x4a] sm:$0xff] %vm243, %v336
        %345 = vst.msk [vmem:[#allocation2 + $0x52] sm:$0xff] %vm243, %v337
        %v346 = vld [vmem:[#allocation2 + $0x1] sm:$0xff]
        %v347 = vld [vmem:[#allocation2 + $0x9] sm:$0xff]
        %v348 = vld [vmem:[#allocation2 + $0x19] sm:$0xff]
        %v349 = vld [vmem:[#allocation2 + $0x21] sm:$0xff]
        %v350 = vld [vmem:[#allocation2 + $0x31] sm:$0xff]
        %v351 = vld [vmem:[#allocation2 + $0x39] sm:$0xff]
        %v352 = vld [vmem:[#allocation2 + $0x49] sm:$0xff]
        %v353 = vld [vmem:[#allocation2 + $0x51] sm:$0xff]
        %v354 = vld [vmem:[#allocation2 + $0x2] sm:$0xff]
        %v355 = vld [vmem:[#allocation2 + $0xa] sm:$0xff]
        %v356 = vld [vmem:[#allocation2 + $0x1a] sm:$0xff]
        %v357 = vld [vmem:[#allocation2 + $0x22] sm:$0xff]
        %v358 = vld [vmem:[#allocation2 + $0x32] sm:$0xff]
        %v359 = vld [vmem:[#allocation2 + $0x3a] sm:$0xff]
        %v360 = vld [vmem:[#allocation2 + $0x4a] sm:$0xff]
        %v361 = vld [vmem:[#allocation2 + $0x52] sm:$0xff]
        %v362 = vmax.f32 %v346, %v354
        %v363 = vmax.f32 %v347, %v355
        %v364 = vmax.f32 %v348, %v356
        %v365 = vmax.f32 %v349, %v357
        %v366 = vmax.f32 %v350, %v358
        %v367 = vmax.f32 %v351, %v359
        %v368 = vmax.f32 %v352, %v360
        %v369 = vmax.f32 %v353, %v361
        %v370 = vld [vmem:[#allocation2 + $0x3] sm:$0xff]
        %v371 = vld [vmem:[#allocation2 + $0xb] sm:$0xff]
        %v372 = vld [vmem:[#allocation2 + $0x1b] sm:$0xff]
        %v373 = vld [vmem:[#allocation2 + $0x23] sm:$0xff]
        %v374 = vld [vmem:[#allocation2 + $0x33] sm:$0xff]
        %v375 = vld [vmem:[#allocation2 + $0x3b] sm:$0xff]
        %v376 = vld [vmem:[#allocation2 + $0x4b] sm:$0xff]
        %v377 = vld [vmem:[#allocation2 + $0x53] sm:$0xff]
        %v378 = vmax.f32 %v362, %v370
        %v379 = vmax.f32 %v363, %v371
        %v380 = vmax.f32 %v364, %v372
        %v381 = vmax.f32 %v365, %v373
        %v382 = vmax.f32 %v366, %v374
        %v383 = vmax.f32 %v367, %v375
        %v384 = vmax.f32 %v368, %v376
        %v385 = vmax.f32 %v369, %v377
        %394 = vrot.lane.b32.xlu0 %v378, 2
        %v395 = vpop.permute.xlu0 %394
        %396 = vrot.lane.b32.xlu0 %v379, 2
        %v397 = vpop.permute.xlu0 %396
        %398 = vrot.lane.b32.xlu0 %v380, 2
        %v399 = vpop.permute.xlu0 %398
        %400 = vrot.lane.b32.xlu0 %v381, 2
        %v401 = vpop.permute.xlu0 %400
        %402 = vrot.lane.b32.xlu0 %v382, 2
        %v403 = vpop.permute.xlu0 %402
        %404 = vrot.lane.b32.xlu0 %v383, 2
        %v405 = vpop.permute.xlu0 %404
        %406 = vrot.lane.b32.xlu0 %v384, 2
        %v407 = vpop.permute.xlu0 %406
        %408 = vrot.lane.b32.xlu0 %v385, 2
        %v409 = vpop.permute.xlu0 %408
        %vm418 = vcmask 146448
        %419 = vst.msk [vmem:[#allocation3] sm:$0xff] %vm418, %v395
        %420 = vst.msk [vmem:[#allocation3 + $0x8] sm:$0xff] %vm418, %v397
        %421 = vst.msk [vmem:[#allocation3 + $0x10] sm:$0xff] %vm418, %v399
        %422 = vst.msk [vmem:[#allocation3 + $0x18] sm:$0xff] %vm418, %v401
        %423 = vst.msk [vmem:[#allocation3 + $0x20] sm:$0xff] %vm418, %v403
        %424 = vst.msk [vmem:[#allocation3 + $0x28] sm:$0xff] %vm418, %v405
        %425 = vst.msk [vmem:[#allocation3 + $0x30] sm:$0xff] %vm418, %v407
        %426 = vst.msk [vmem:[#allocation3 + $0x38] sm:$0xff] %vm418, %v409
        %v427 = vld [vmem:[#allocation3] sm:$0xff]
        %v428 = vld [vmem:[#allocation3 + $0x8] sm:$0xff]
        %v429 = vld [vmem:[#allocation3 + $0x10] sm:$0xff]
        %v430 = vld [vmem:[#allocation3 + $0x18] sm:$0xff]
        %v431 = vld [vmem:[#allocation3 + $0x20] sm:$0xff]
        %v432 = vld [vmem:[#allocation3 + $0x28] sm:$0xff]
        %v433 = vld [vmem:[#allocation3 + $0x30] sm:$0xff]
        %v434 = vld [vmem:[#allocation3 + $0x38] sm:$0xff]
        %443 = vrot.lane.b32.xlu0 %v427, 127
        %v444 = vpop.permute.xlu0 %443
        %445 = vrot.lane.b32.xlu0 %v428, 127
        %v446 = vpop.permute.xlu0 %445
        %447 = vrot.lane.b32.xlu0 %v429, 127
        %v448 = vpop.permute.xlu0 %447
        %449 = vrot.lane.b32.xlu0 %v430, 127
        %v450 = vpop.permute.xlu0 %449
        %451 = vrot.lane.b32.xlu0 %v431, 127
        %v452 = vpop.permute.xlu0 %451
        %453 = vrot.lane.b32.xlu0 %v432, 127
        %v454 = vpop.permute.xlu0 %453
        %455 = vrot.lane.b32.xlu0 %v433, 127
        %v456 = vpop.permute.xlu0 %455
        %457 = vrot.lane.b32.xlu0 %v434, 127
        %v458 = vpop.permute.xlu0 %457
        %v467 = vmax.f32 %v427, %v444
        %v468 = vmax.f32 %v428, %v446
        %v469 = vmax.f32 %v429, %v448
        %v470 = vmax.f32 %v430, %v450
        %v471 = vmax.f32 %v431, %v452
        %v472 = vmax.f32 %v432, %v454
        %v473 = vmax.f32 %v433, %v456
        %v474 = vmax.f32 %v434, %v458
        %475 = vrot.lane.b32.xlu0 %v427, 126
        %v476 = vpop.permute.xlu0 %475
        %477 = vrot.lane.b32.xlu0 %v428, 126
        %v478 = vpop.permute.xlu0 %477
        %479 = vrot.lane.b32.xlu0 %v429, 126
        %v480 = vpop.permute.xlu0 %479
        %481 = vrot.lane.b32.xlu0 %v430, 126
        %v482 = vpop.permute.xlu0 %481
        %483 = vrot.lane.b32.xlu0 %v431, 126
        %v484 = vpop.permute.xlu0 %483
        %485 = vrot.lane.b32.xlu0 %v432, 126
        %v486 = vpop.permute.xlu0 %485
        %487 = vrot.lane.b32.xlu0 %v433, 126
        %v488 = vpop.permute.xlu0 %487
        %489 = vrot.lane.b32.xlu0 %v434, 126
        %v490 = vpop.permute.xlu0 %489
        %v499 = vmax.f32 %v467, %v476
        %v500 = vmax.f32 %v468, %v478
        %v501 = vmax.f32 %v469, %v480
        %v502 = vmax.f32 %v470, %v482
        %v503 = vmax.f32 %v471, %v484
        %v504 = vmax.f32 %v472, %v486
        %v505 = vmax.f32 %v473, %v488
        %v506 = vmax.f32 %v474, %v490
        %515 = vrot.lane.b32.xlu0 %v330, 1
        %v516 = vpop.permute.xlu0 %515
        %517 = vrot.lane.b32.xlu0 %v331, 1
        %v518 = vpop.permute.xlu0 %517
        %519 = vrot.lane.b32.xlu0 %v332, 1
        %v520 = vpop.permute.xlu0 %519
        %521 = vrot.lane.b32.xlu0 %v333, 1
        %v522 = vpop.permute.xlu0 %521
        %523 = vrot.lane.b32.xlu0 %v334, 1
        %v524 = vpop.permute.xlu0 %523
        %525 = vrot.lane.b32.xlu0 %v335, 1
        %v526 = vpop.permute.xlu0 %525
        %527 = vrot.lane.b32.xlu0 %v336, 1
        %v528 = vpop.permute.xlu0 %527
        %529 = vrot.lane.b32.xlu0 %v337, 1
        %v530 = vpop.permute.xlu0 %529
        %v539 = vsub.f32 %v499, %v516
        %v540 = vsub.f32 %v500, %v518
        %v541 = vsub.f32 %v501, %v520
        %v542 = vsub.f32 %v502, %v522
        %v543 = vsub.f32 %v503, %v524
        %v544 = vsub.f32 %v504, %v526
        %v545 = vsub.f32 %v505, %v528
        %v546 = vsub.f32 %v506, %v530
        %555 = vrot.lane.b32.xlu0 %v539, 127
        %v556 = vpop.permute.xlu0 %555
        %557 = vrot.lane.b32.xlu0 %v540, 127
        %v558 = vpop.permute.xlu0 %557
        %559 = vrot.lane.b32.xlu0 %v541, 127
        %v560 = vpop.permute.xlu0 %559
        %561 = vrot.lane.b32.xlu0 %v542, 127
        %v562 = vpop.permute.xlu0 %561
        %563 = vrot.lane.b32.xlu0 %v543, 127
        %v564 = vpop.permute.xlu0 %563
        %565 = vrot.lane.b32.xlu0 %v544, 127
        %v566 = vpop.permute.xlu0 %565
        %567 = vrot.lane.b32.xlu0 %v545, 127
        %v568 = vpop.permute.xlu0 %567
        %569 = vrot.lane.b32.xlu0 %v546, 127
        %v570 = vpop.permute.xlu0 %569
        %579 = vst.msk [vmem:[#allocation2 + $0x2] sm:$0xff] %vm243, %v556
        %580 = vst.msk [vmem:[#allocation2 + $0xa] sm:$0xff] %vm243, %v558
        %581 = vst.msk [vmem:[#allocation2 + $0x1a] sm:$0xff] %vm243, %v560
        %582 = vst.msk [vmem:[#allocation2 + $0x22] sm:$0xff] %vm243, %v562
        %583 = vst.msk [vmem:[#allocation2 + $0x32] sm:$0xff] %vm243, %v564
        %584 = vst.msk [vmem:[#allocation2 + $0x3a] sm:$0xff] %vm243, %v566
        %585 = vst.msk [vmem:[#allocation2 + $0x4a] sm:$0xff] %vm243, %v568
        %586 = vst.msk [vmem:[#allocation2 + $0x52] sm:$0xff] %vm243, %v570
        %v587 = vld [vmem:[#allocation2] sm:$0xff]
        %v588 = vld [vmem:[#allocation2 + $0x8] sm:$0xff]
        %v589 = vld [vmem:[#allocation2 + $0x18] sm:$0xff]
        %v590 = vld [vmem:[#allocation2 + $0x20] sm:$0xff]
        %v591 = vld [vmem:[#allocation2 + $0x30] sm:$0xff]
        %v592 = vld [vmem:[#allocation2 + $0x38] sm:$0xff]
        %v593 = vld [vmem:[#allocation2 + $0x48] sm:$0xff]
        %v594 = vld [vmem:[#allocation2 + $0x50] sm:$0xff]
        %v595 = vld [vmem:[#allocation2 + $0x1] sm:$0xff]
        %v596 = vld [vmem:[#allocation2 + $0x9] sm:$0xff]
        %v597 = vld [vmem:[#allocation2 + $0x19] sm:$0xff]
        %v598 = vld [vmem:[#allocation2 + $0x21] sm:$0xff]
        %v599 = vld [vmem:[#allocation2 + $0x31] sm:$0xff]
        %v600 = vld [vmem:[#allocation2 + $0x39] sm:$0xff]
        %v601 = vld [vmem:[#allocation2 + $0x49] sm:$0xff]
        %v602 = vld [vmem:[#allocation2 + $0x51] sm:$0xff]
        %v603 = vmax.f32 %v587, %v595
        %v604 = vmax.f32 %v588, %v596
        %v605 = vmax.f32 %v589, %v597
        %v606 = vmax.f32 %v590, %v598
        %v607 = vmax.f32 %v591, %v599
        %v608 = vmax.f32 %v592, %v600
        %v609 = vmax.f32 %v593, %v601
        %v610 = vmax.f32 %v594, %v602
        %v611 = vld [vmem:[#allocation2 + $0x2] sm:$0xff]
        %v612 = vld [vmem:[#allocation2 + $0xa] sm:$0xff]
        %v613 = vld [vmem:[#allocation2 + $0x1a] sm:$0xff]
        %v614 = vld [vmem:[#allocation2 + $0x22] sm:$0xff]
        %v615 = vld [vmem:[#allocation2 + $0x32] sm:$0xff]
        %v616 = vld [vmem:[#allocation2 + $0x3a] sm:$0xff]
        %v617 = vld [vmem:[#allocation2 + $0x4a] sm:$0xff]
        %v618 = vld [vmem:[#allocation2 + $0x52] sm:$0xff]
        %v619 = vmax.f32 %v603, %v611
        %v620 = vmax.f32 %v604, %v612
        %v621 = vmax.f32 %v605, %v613
        %v622 = vmax.f32 %v606, %v614
        %v623 = vmax.f32 %v607, %v615
        %v624 = vmax.f32 %v608, %v616
        %v625 = vmax.f32 %v609, %v617
        %v626 = vmax.f32 %v610, %v618
        %v627 = vld [vmem:[#allocation2 + $0x3] sm:$0xff]
        %v628 = vld [vmem:[#allocation2 + $0xb] sm:$0xff]
        %v629 = vld [vmem:[#allocation2 + $0x1b] sm:$0xff]
        %v630 = vld [vmem:[#allocation2 + $0x23] sm:$0xff]
        %v631 = vld [vmem:[#allocation2 + $0x33] sm:$0xff]
        %v632 = vld [vmem:[#allocation2 + $0x3b] sm:$0xff]
        %v633 = vld [vmem:[#allocation2 + $0x4b] sm:$0xff]
        %v634 = vld [vmem:[#allocation2 + $0x53] sm:$0xff]
        %v635 = vmax.f32 %v619, %v627
        %v636 = vmax.f32 %v620, %v628
        %v637 = vmax.f32 %v621, %v629
        %v638 = vmax.f32 %v622, %v630
        %v639 = vmax.f32 %v623, %v631
        %v640 = vmax.f32 %v624, %v632
        %v641 = vmax.f32 %v625, %v633
        %v642 = vmax.f32 %v626, %v634
        %v643 = vld [vmem:[#allocation2 + $0x4] sm:$0xff]
        %v644 = vld [vmem:[#allocation2 + $0xc] sm:$0xff]
        %v645 = vld [vmem:[#allocation2 + $0x1c] sm:$0xff]
        %v646 = vld [vmem:[#allocation2 + $0x24] sm:$0xff]
        %v647 = vld [vmem:[#allocation2 + $0x34] sm:$0xff]
        %v648 = vld [vmem:[#allocation2 + $0x3c] sm:$0xff]
        %v649 = vld [vmem:[#allocation2 + $0x4c] sm:$0xff]
        %v650 = vld [vmem:[#allocation2 + $0x54] sm:$0xff]
        %v651 = vmax.f32 %v635, %v643
        %v652 = vmax.f32 %v636, %v644
        %v653 = vmax.f32 %v637, %v645
        %v654 = vmax.f32 %v638, %v646
        %v655 = vmax.f32 %v639, %v647
        %v656 = vmax.f32 %v640, %v648
        %v657 = vmax.f32 %v641, %v649
        %v658 = vmax.f32 %v642, %v650
        %667 = vrot.lane.b32.xlu0 %v651, 2
        %v668 = vpop.permute.xlu0 %667
        %669 = vrot.lane.b32.xlu0 %v652, 2
        %v670 = vpop.permute.xlu0 %669
        %671 = vrot.lane.b32.xlu0 %v653, 2
        %v672 = vpop.permute.xlu0 %671
        %673 = vrot.lane.b32.xlu0 %v654, 2
        %v674 = vpop.permute.xlu0 %673
        %675 = vrot.lane.b32.xlu0 %v655, 2
        %v676 = vpop.permute.xlu0 %675
        %677 = vrot.lane.b32.xlu0 %v656, 2
        %v678 = vpop.permute.xlu0 %677
        %679 = vrot.lane.b32.xlu0 %v657, 2
        %v680 = vpop.permute.xlu0 %679
        %681 = vrot.lane.b32.xlu0 %v658, 2
        %v682 = vpop.permute.xlu0 %681
        %691 = vst.msk [vmem:[#allocation3] sm:$0xff] %vm418, %v668
        %692 = vst.msk [vmem:[#allocation3 + $0x8] sm:$0xff] %vm418, %v670
        %693 = vst.msk [vmem:[#allocation3 + $0x10] sm:$0xff] %vm418, %v672
        %694 = vst.msk [vmem:[#allocation3 + $0x18] sm:$0xff] %vm418, %v674
        %695 = vst.msk [vmem:[#allocation3 + $0x20] sm:$0xff] %vm418, %v676
        %696 = vst.msk [vmem:[#allocation3 + $0x28] sm:$0xff] %vm418, %v678
        %697 = vst.msk [vmem:[#allocation3 + $0x30] sm:$0xff] %vm418, %v680
        %698 = vst.msk [vmem:[#allocation3 + $0x38] sm:$0xff] %vm418, %v682
        %v699 = vld [vmem:[#allocation3] sm:$0xff]
        %v700 = vld [vmem:[#allocation3 + $0x8] sm:$0xff]
        %v701 = vld [vmem:[#allocation3 + $0x10] sm:$0xff]
        %v702 = vld [vmem:[#allocation3 + $0x18] sm:$0xff]
        %v703 = vld [vmem:[#allocation3 + $0x20] sm:$0xff]
        %v704 = vld [vmem:[#allocation3 + $0x28] sm:$0xff]
        %v705 = vld [vmem:[#allocation3 + $0x30] sm:$0xff]
        %v706 = vld [vmem:[#allocation3 + $0x38] sm:$0xff]
        %715 = vrot.lane.b32.xlu0 %v699, 127
        %v716 = vpop.permute.xlu0 %715
        %717 = vrot.lane.b32.xlu0 %v700, 127
        %v718 = vpop.permute.xlu0 %717
        %719 = vrot.lane.b32.xlu0 %v701, 127
        %v720 = vpop.permute.xlu0 %719
        %721 = vrot.lane.b32.xlu0 %v702, 127
        %v722 = vpop.permute.xlu0 %721
        %723 = vrot.lane.b32.xlu0 %v703, 127
        %v724 = vpop.permute.xlu0 %723
        %725 = vrot.lane.b32.xlu0 %v704, 127
        %v726 = vpop.permute.xlu0 %725
        %727 = vrot.lane.b32.xlu0 %v705, 127
        %v728 = vpop.permute.xlu0 %727
        %729 = vrot.lane.b32.xlu0 %v706, 127
        %v730 = vpop.permute.xlu0 %729
        %v739 = vmax.f32 %v699, %v716
        %v740 = vmax.f32 %v700, %v718
        %v741 = vmax.f32 %v701, %v720
        %v742 = vmax.f32 %v702, %v722
        %v743 = vmax.f32 %v703, %v724
        %v744 = vmax.f32 %v704, %v726
        %v745 = vmax.f32 %v705, %v728
        %v746 = vmax.f32 %v706, %v730
        %747 = vrot.lane.b32.xlu0 %v699, 126
        %v748 = vpop.permute.xlu0 %747
        %749 = vrot.lane.b32.xlu0 %v700, 126
        %v750 = vpop.permute.xlu0 %749
        %751 = vrot.lane.b32.xlu0 %v701, 126
        %v752 = vpop.permute.xlu0 %751
        %753 = vrot.lane.b32.xlu0 %v702, 126
        %v754 = vpop.permute.xlu0 %753
        %755 = vrot.lane.b32.xlu0 %v703, 126
        %v756 = vpop.permute.xlu0 %755
        %757 = vrot.lane.b32.xlu0 %v704, 126
        %v758 = vpop.permute.xlu0 %757
        %759 = vrot.lane.b32.xlu0 %v705, 126
        %v760 = vpop.permute.xlu0 %759
        %761 = vrot.lane.b32.xlu0 %v706, 126
        %v762 = vpop.permute.xlu0 %761
        %v771 = vmax.f32 %v739, %v748
        %v772 = vmax.f32 %v740, %v750
        %v773 = vmax.f32 %v741, %v752
        %v774 = vmax.f32 %v742, %v754
        %v775 = vmax.f32 %v743, %v756
        %v776 = vmax.f32 %v744, %v758
        %v777 = vmax.f32 %v745, %v760
        %v778 = vmax.f32 %v746, %v762
        %779 = vrot.lane.b32.xlu0 %v699, 125
        %v780 = vpop.permute.xlu0 %779
        %781 = vrot.lane.b32.xlu0 %v700, 125
        %v782 = vpop.permute.xlu0 %781
        %783 = vrot.lane.b32.xlu0 %v701, 125
        %v784 = vpop.permute.xlu0 %783
        %785 = vrot.lane.b32.xlu0 %v702, 125
        %v786 = vpop.permute.xlu0 %785
        %787 = vrot.lane.b32.xlu0 %v703, 125
        %v788 = vpop.permute.xlu0 %787
        %789 = vrot.lane.b32.xlu0 %v704, 125
        %v790 = vpop.permute.xlu0 %789
        %791 = vrot.lane.b32.xlu0 %v705, 125
        %v792 = vpop.permute.xlu0 %791
        %793 = vrot.lane.b32.xlu0 %v706, 125
        %v794 = vpop.permute.xlu0 %793
        %v803 = vmax.f32 %v771, %v780
        %v804 = vmax.f32 %v772, %v782
        %v805 = vmax.f32 %v773, %v784
        %v806 = vmax.f32 %v774, %v786
        %v807 = vmax.f32 %v775, %v788
        %v808 = vmax.f32 %v776, %v790
        %v809 = vmax.f32 %v777, %v792
        %v810 = vmax.f32 %v778, %v794
        %811 = vrot.lane.b32.xlu0 %v699, 124
        %v812 = vpop.permute.xlu0 %811
        %813 = vrot.lane.b32.xlu0 %v700, 124
        %v814 = vpop.permute.xlu0 %813
        %815 = vrot.lane.b32.xlu0 %v701, 124
        %v816 = vpop.permute.xlu0 %815
        %817 = vrot.lane.b32.xlu0 %v702, 124
        %v818 = vpop.permute.xlu0 %817
        %819 = vrot.lane.b32.xlu0 %v703, 124
        %v820 = vpop.permute.xlu0 %819
        %821 = vrot.lane.b32.xlu0 %v704, 124
        %v822 = vpop.permute.xlu0 %821
        %823 = vrot.lane.b32.xlu0 %v705, 124
        %v824 = vpop.permute.xlu0 %823
        %825 = vrot.lane.b32.xlu0 %v706, 124
        %v826 = vpop.permute.xlu0 %825
        %v835 = vmax.f32 %v803, %v812
        %v836 = vmax.f32 %v804, %v814
        %v837 = vmax.f32 %v805, %v816
        %v838 = vmax.f32 %v806, %v818
        %v839 = vmax.f32 %v807, %v820
        %v840 = vmax.f32 %v808, %v822
        %v841 = vmax.f32 %v809, %v824
        %v842 = vmax.f32 %v810, %v826
        %v843 = vsub.f32 1.0, %v298
        %v844 = vsub.f32 1.0, %v299
        %v845 = vsub.f32 1.0, %v300
        %v846 = vsub.f32 1.0, %v301
        %v847 = vsub.f32 1.0, %v302
        %v848 = vsub.f32 1.0, %v303
        %v849 = vsub.f32 1.0, %v304
        %v850 = vsub.f32 1.0, %v305
        %851 = vst.msk [vmem:[#allocation2 + $0x2] sm:$0xff] %vm243, %v843
        %852 = vst.msk [vmem:[#allocation2 + $0xa] sm:$0xff] %vm243, %v844
        %853 = vst.msk [vmem:[#allocation2 + $0x1a] sm:$0xff] %vm243, %v845
        %854 = vst.msk [vmem:[#allocation2 + $0x22] sm:$0xff] %vm243, %v846
        %855 = vst.msk [vmem:[#allocation2 + $0x32] sm:$0xff] %vm243, %v847
        %856 = vst.msk [vmem:[#allocation2 + $0x3a] sm:$0xff] %vm243, %v848
        %857 = vst.msk [vmem:[#allocation2 + $0x4a] sm:$0xff] %vm243, %v849
        %858 = vst.msk [vmem:[#allocation2 + $0x52] sm:$0xff] %vm243, %v850
        %v859 = vld [vmem:[#allocation2 + $0x1] sm:$0xff]
        %v860 = vld [vmem:[#allocation2 + $0x9] sm:$0xff]
        %v861 = vld [vmem:[#allocation2 + $0x19] sm:$0xff]
        %v862 = vld [vmem:[#allocation2 + $0x21] sm:$0xff]
        %v863 = vld [vmem:[#allocation2 + $0x31] sm:$0xff]
        %v864 = vld [vmem:[#allocation2 + $0x39] sm:$0xff]
        %v865 = vld [vmem:[#allocation2 + $0x49] sm:$0xff]
        %v866 = vld [vmem:[#allocation2 + $0x51] sm:$0xff]
        %v867 = vld [vmem:[#allocation2 + $0x2] sm:$0xff]
        %v868 = vld [vmem:[#allocation2 + $0xa] sm:$0xff]
        %v869 = vld [vmem:[#allocation2 + $0x1a] sm:$0xff]
        %v870 = vld [vmem:[#allocation2 + $0x22] sm:$0xff]
        %v871 = vld [vmem:[#allocation2 + $0x32] sm:$0xff]
        %v872 = vld [vmem:[#allocation2 + $0x3a] sm:$0xff]
        %v873 = vld [vmem:[#allocation2 + $0x4a] sm:$0xff]
        %v874 = vld [vmem:[#allocation2 + $0x52] sm:$0xff]
        %v875 = vmax.f32 %v859, %v867
        %v876 = vmax.f32 %v860, %v868
        %v877 = vmax.f32 %v861, %v869
        %v878 = vmax.f32 %v862, %v870
        %v879 = vmax.f32 %v863, %v871
        %v880 = vmax.f32 %v864, %v872
        %v881 = vmax.f32 %v865, %v873
        %v882 = vmax.f32 %v866, %v874
        %v883 = vld [vmem:[#allocation2 + $0x3] sm:$0xff]
        %v884 = vld [vmem:[#allocation2 + $0xb] sm:$0xff]
        %v885 = vld [vmem:[#allocation2 + $0x1b] sm:$0xff]
        %v886 = vld [vmem:[#allocation2 + $0x23] sm:$0xff]
        %v887 = vld [vmem:[#allocation2 + $0x33] sm:$0xff]
        %v888 = vld [vmem:[#allocation2 + $0x3b] sm:$0xff]
        %v889 = vld [vmem:[#allocation2 + $0x4b] sm:$0xff]
        %v890 = vld [vmem:[#allocation2 + $0x53] sm:$0xff]
        %v891 = vmax.f32 %v875, %v883
        %v892 = vmax.f32 %v876, %v884
        %v893 = vmax.f32 %v877, %v885
        %v894 = vmax.f32 %v878, %v886
        %v895 = vmax.f32 %v879, %v887
        %v896 = vmax.f32 %v880, %v888
        %v897 = vmax.f32 %v881, %v889
        %v898 = vmax.f32 %v882, %v890
        %907 = vrot.lane.b32.xlu0 %v891, 2
        %v908 = vpop.permute.xlu0 %907
        %909 = vrot.lane.b32.xlu0 %v892, 2
        %v910 = vpop.permute.xlu0 %909
        %911 = vrot.lane.b32.xlu0 %v893, 2
        %v912 = vpop.permute.xlu0 %911
        %913 = vrot.lane.b32.xlu0 %v894, 2
        %v914 = vpop.permute.xlu0 %913
        %915 = vrot.lane.b32.xlu0 %v895, 2
        %v916 = vpop.permute.xlu0 %915
        %917 = vrot.lane.b32.xlu0 %v896, 2
        %v918 = vpop.permute.xlu0 %917
        %919 = vrot.lane.b32.xlu0 %v897, 2
        %v920 = vpop.permute.xlu0 %919
        %921 = vrot.lane.b32.xlu0 %v898, 2
        %v922 = vpop.permute.xlu0 %921
        %931 = vst.msk [vmem:[#allocation3] sm:$0xff] %vm418, %v908
        %932 = vst.msk [vmem:[#allocation3 + $0x8] sm:$0xff] %vm418, %v910
        %933 = vst.msk [vmem:[#allocation3 + $0x10] sm:$0xff] %vm418, %v912
        %934 = vst.msk [vmem:[#allocation3 + $0x18] sm:$0xff] %vm418, %v914
        %935 = vst.msk [vmem:[#allocation3 + $0x20] sm:$0xff] %vm418, %v916
        %936 = vst.msk [vmem:[#allocation3 + $0x28] sm:$0xff] %vm418, %v918
        %937 = vst.msk [vmem:[#allocation3 + $0x30] sm:$0xff] %vm418, %v920
        %938 = vst.msk [vmem:[#allocation3 + $0x38] sm:$0xff] %vm418, %v922
        %v939 = vld [vmem:[#allocation3] sm:$0xff]
        %v940 = vld [vmem:[#allocation3 + $0x8] sm:$0xff]
        %v941 = vld [vmem:[#allocation3 + $0x10] sm:$0xff]
        %v942 = vld [vmem:[#allocation3 + $0x18] sm:$0xff]
        %v943 = vld [vmem:[#allocation3 + $0x20] sm:$0xff]
        %v944 = vld [vmem:[#allocation3 + $0x28] sm:$0xff]
        %v945 = vld [vmem:[#allocation3 + $0x30] sm:$0xff]
        %v946 = vld [vmem:[#allocation3 + $0x38] sm:$0xff]
        %955 = vrot.lane.b32.xlu0 %v939, 127
        %v956 = vpop.permute.xlu0 %955
        %957 = vrot.lane.b32.xlu0 %v940, 127
        %v958 = vpop.permute.xlu0 %957
        %959 = vrot.lane.b32.xlu0 %v941, 127
        %v960 = vpop.permute.xlu0 %959
        %961 = vrot.lane.b32.xlu0 %v942, 127
        %v962 = vpop.permute.xlu0 %961
        %963 = vrot.lane.b32.xlu0 %v943, 127
        %v964 = vpop.permute.xlu0 %963
        %965 = vrot.lane.b32.xlu0 %v944, 127
        %v966 = vpop.permute.xlu0 %965
        %967 = vrot.lane.b32.xlu0 %v945, 127
        %v968 = vpop.permute.xlu0 %967
        %969 = vrot.lane.b32.xlu0 %v946, 127
        %v970 = vpop.permute.xlu0 %969
        %v979 = vmax.f32 %v939, %v956
        %v980 = vmax.f32 %v940, %v958
        %v981 = vmax.f32 %v941, %v960
        %v982 = vmax.f32 %v942, %v962
        %v983 = vmax.f32 %v943, %v964
        %v984 = vmax.f32 %v944, %v966
        %v985 = vmax.f32 %v945, %v968
        %v986 = vmax.f32 %v946, %v970
        %987 = vrot.lane.b32.xlu0 %v939, 126
        %v988 = vpop.permute.xlu0 %987
        %989 = vrot.lane.b32.xlu0 %v940, 126
        %v990 = vpop.permute.xlu0 %989
        %991 = vrot.lane.b32.xlu0 %v941, 126
        %v992 = vpop.permute.xlu0 %991
        %993 = vrot.lane.b32.xlu0 %v942, 126
        %v994 = vpop.permute.xlu0 %993
        %995 = vrot.lane.b32.xlu0 %v943, 126
        %v996 = vpop.permute.xlu0 %995
        %997 = vrot.lane.b32.xlu0 %v944, 126
        %v998 = vpop.permute.xlu0 %997
        %999 = vrot.lane.b32.xlu0 %v945, 126
        %v1000 = vpop.permute.xlu0 %999
        %1001 = vrot.lane.b32.xlu0 %v946, 126
        %v1002 = vpop.permute.xlu0 %1001
        %v1011 = vmax.f32 %v979, %v988
        %v1012 = vmax.f32 %v980, %v990
        %v1013 = vmax.f32 %v981, %v992
        %v1014 = vmax.f32 %v982, %v994
        %v1015 = vmax.f32 %v983, %v996
        %v1016 = vmax.f32 %v984, %v998
        %v1017 = vmax.f32 %v985, %v1000
        %v1018 = vmax.f32 %v986, %v1002
        %1027 = vrot.lane.b32.xlu0 %v843, 1
        %v1028 = vpop.permute.xlu0 %1027
        %1029 = vrot.lane.b32.xlu0 %v844, 1
        %v1030 = vpop.permute.xlu0 %1029
        %1031 = vrot.lane.b32.xlu0 %v845, 1
        %v1032 = vpop.permute.xlu0 %1031
        %1033 = vrot.lane.b32.xlu0 %v846, 1
        %v1034 = vpop.permute.xlu0 %1033
        %1035 = vrot.lane.b32.xlu0 %v847, 1
        %v1036 = vpop.permute.xlu0 %1035
        %1037 = vrot.lane.b32.xlu0 %v848, 1
        %v1038 = vpop.permute.xlu0 %1037
        %1039 = vrot.lane.b32.xlu0 %v849, 1
        %v1040 = vpop.permute.xlu0 %1039
        %1041 = vrot.lane.b32.xlu0 %v850, 1
        %v1042 = vpop.permute.xlu0 %1041
        %v1051 = vsub.f32 %v1011, %v1028
        %v1052 = vsub.f32 %v1012, %v1030
        %v1053 = vsub.f32 %v1013, %v1032
        %v1054 = vsub.f32 %v1014, %v1034
        %v1055 = vsub.f32 %v1015, %v1036
        %v1056 = vsub.f32 %v1016, %v1038
        %v1057 = vsub.f32 %v1017, %v1040
        %v1058 = vsub.f32 %v1018, %v1042
        %1067 = vrot.lane.b32.xlu0 %v835, 1
        %v1068 = vpop.permute.xlu0 %1067
        %1069 = vrot.lane.b32.xlu0 %v836, 1
        %v1070 = vpop.permute.xlu0 %1069
        %1071 = vrot.lane.b32.xlu0 %v837, 1
        %v1072 = vpop.permute.xlu0 %1071
        %1073 = vrot.lane.b32.xlu0 %v838, 1
        %v1074 = vpop.permute.xlu0 %1073
        %1075 = vrot.lane.b32.xlu0 %v839, 1
        %v1076 = vpop.permute.xlu0 %1075
        %1077 = vrot.lane.b32.xlu0 %v840, 1
        %v1078 = vpop.permute.xlu0 %1077
        %1079 = vrot.lane.b32.xlu0 %v841, 1
        %v1080 = vpop.permute.xlu0 %1079
        %1081 = vrot.lane.b32.xlu0 %v842, 1
        %v1082 = vpop.permute.xlu0 %1081
        %v1091 = vmul.f32 %v1051, %v1068
        %v1092 = vmul.f32 %v1052, %v1070
        %v1093 = vmul.f32 %v1053, %v1072
        %v1094 = vmul.f32 %v1054, %v1074
        %v1095 = vmul.f32 %v1055, %v1076
        %v1096 = vmul.f32 %v1056, %v1078
        %v1097 = vmul.f32 %v1057, %v1080
        %v1098 = vmul.f32 %v1058, %v1082
        %1107 = vrot.lane.b32.xlu0 %v1091, 127
        %v1108 = vpop.permute.xlu0 %1107
        %1109 = vrot.lane.b32.xlu0 %v1092, 127
        %v1110 = vpop.permute.xlu0 %1109
        %1111 = vrot.lane.b32.xlu0 %v1093, 127
        %v1112 = vpop.permute.xlu0 %1111
        %1113 = vrot.lane.b32.xlu0 %v1094, 127
        %v1114 = vpop.permute.xlu0 %1113
        %1115 = vrot.lane.b32.xlu0 %v1095, 127
        %v1116 = vpop.permute.xlu0 %1115
        %1117 = vrot.lane.b32.xlu0 %v1096, 127
        %v1118 = vpop.permute.xlu0 %1117
        %1119 = vrot.lane.b32.xlu0 %v1097, 127
        %v1120 = vpop.permute.xlu0 %1119
        %1121 = vrot.lane.b32.xlu0 %v1098, 127
        %v1122 = vpop.permute.xlu0 %1121
        %v1131 = vsel %vm243, %v1108, 0.0
        %1132 = vadd.xlane.f32.xlu0 %v1131
        %v1133 = vpop.xlane.xlu0 %1132
        %v1134 = vsel %vm243, %v1110, 0.0
        %1135 = vadd.xlane.f32.xlu0 %v1134
        %v1136 = vpop.xlane.xlu0 %1135
        %v1137 = vsel %vm243, %v1112, 0.0
        %1138 = vadd.xlane.f32.xlu0 %v1137
        %v1139 = vpop.xlane.xlu0 %1138
        %v1140 = vsel %vm243, %v1114, 0.0
        %1141 = vadd.xlane.f32.xlu0 %v1140
        %v1142 = vpop.xlane.xlu0 %1141
        %v1143 = vsel %vm243, %v1116, 0.0
        %1144 = vadd.xlane.f32.xlu0 %v1143
        %v1145 = vpop.xlane.xlu0 %1144
        %v1146 = vsel %vm243, %v1118, 0.0
        %1147 = vadd.xlane.f32.xlu0 %v1146
        %v1148 = vpop.xlane.xlu0 %1147
        %v1149 = vsel %vm243, %v1120, 0.0
        %1150 = vadd.xlane.f32.xlu0 %v1149
        %v1151 = vpop.xlane.xlu0 %1150
        %v1152 = vsel %vm243, %v1122, 0.0
        %1153 = vadd.xlane.f32.xlu0 %v1152
        %v1154 = vpop.xlane.xlu0 %1153
        %v1163 = vlaneseq
        %v1164 = vand.u32 %v1163, 127
        %v1165 = vperm.slane %v1133, %v1164
        %v1166 = vadd.s32 %v1164, 4294967288
        %v1167 = vperm.slane %v1136, %v1166
        %vm1168 = vcmask 130112
        %v1169 = vsel %vm1168, %v1167, %v1165
        %v1170 = vperm.slane %v1139, %v1164
        %v1171 = vperm.slane %v1142, %v1166
        %v1172 = vsel %vm1168, %v1171, %v1170
        %v1173 = vperm.slane %v1145, %v1164
        %v1174 = vperm.slane %v1148, %v1166
        %v1175 = vsel %vm1168, %v1174, %v1173
        %v1176 = vperm.slane %v1151, %v1164
        %v1177 = vperm.slane %v1154, %v1166
        %v1178 = vsel %vm1168, %v1177, %v1176
        %vm1179 = vcmask 1041409
        %v1180 = vsel %vm1179, %v1172, %v1169
        %vm1181 = vcmask 1042434
        %v1182 = vsel %vm1181, %v1175, %v1180
        %vm1183 = vcmask 1043459
        %v1184 = vsel %vm1183, %v1178, %v1182
        %vm1186 = vcmask 125952
        %v1187 = vsel %vm1186, %v1184, 0.0
        %1188 = vadd.xlane.f32.xlu0 %v1187
        %v1189 = vpop.xlane.xlu0 %1188
        %1198 = vrot.lane.b32.xlu0 %v1051, 127
        %v1199 = vpop.permute.xlu0 %1198
        %1200 = vrot.lane.b32.xlu0 %v1052, 127
        %v1201 = vpop.permute.xlu0 %1200
        %1202 = vrot.lane.b32.xlu0 %v1053, 127
        %v1203 = vpop.permute.xlu0 %1202
        %1204 = vrot.lane.b32.xlu0 %v1054, 127
        %v1205 = vpop.permute.xlu0 %1204
        %1206 = vrot.lane.b32.xlu0 %v1055, 127
        %v1207 = vpop.permute.xlu0 %1206
        %1208 = vrot.lane.b32.xlu0 %v1056, 127
        %v1209 = vpop.permute.xlu0 %1208
        %1210 = vrot.lane.b32.xlu0 %v1057, 127
        %v1211 = vpop.permute.xlu0 %1210
        %1212 = vrot.lane.b32.xlu0 %v1058, 127
        %v1213 = vpop.permute.xlu0 %1212
        %v1222 = vsel %vm243, %v1199, 0.0
        %1223 = vadd.xlane.f32.xlu0 %v1222
        %v1224 = vpop.xlane.xlu0 %1223
        %v1225 = vsel %vm243, %v1201, 0.0
        %1226 = vadd.xlane.f32.xlu0 %v1225
        %v1227 = vpop.xlane.xlu0 %1226
        %v1228 = vsel %vm243, %v1203, 0.0
        %1229 = vadd.xlane.f32.xlu0 %v1228
        %v1230 = vpop.xlane.xlu0 %1229
        %v1231 = vsel %vm243, %v1205, 0.0
        %1232 = vadd.xlane.f32.xlu0 %v1231
        %v1233 = vpop.xlane.xlu0 %1232
        %v1234 = vsel %vm243, %v1207, 0.0
        %1235 = vadd.xlane.f32.xlu0 %v1234
        %v1236 = vpop.xlane.xlu0 %1235
        %v1237 = vsel %vm243, %v1209, 0.0
        %1238 = vadd.xlane.f32.xlu0 %v1237
        %v1239 = vpop.xlane.xlu0 %1238
        %v1240 = vsel %vm243, %v1211, 0.0
        %1241 = vadd.xlane.f32.xlu0 %v1240
        %v1242 = vpop.xlane.xlu0 %1241
        %v1243 = vsel %vm243, %v1213, 0.0
        %1244 = vadd.xlane.f32.xlu0 %v1243
        %v1245 = vpop.xlane.xlu0 %1244
        %v1254 = vperm.slane %v1224, %v1164
        %v1255 = vperm.slane %v1227, %v1166
        %v1256 = vsel %vm1168, %v1255, %v1254
        %v1257 = vperm.slane %v1230, %v1164
        %v1258 = vperm.slane %v1233, %v1166
        %v1259 = vsel %vm1168, %v1258, %v1257
        %v1260 = vperm.slane %v1236, %v1164
        %v1261 = vperm.slane %v1239, %v1166
        %v1262 = vsel %vm1168, %v1261, %v1260
        %v1263 = vperm.slane %v1242, %v1164
        %v1264 = vperm.slane %v1245, %v1166
        %v1265 = vsel %vm1168, %v1264, %v1263
        %v1266 = vsel %vm1179, %v1259, %v1256
        %v1267 = vsel %vm1181, %v1262, %v1266
        %v1268 = vsel %vm1183, %v1265, %v1267
        %v1270 = vsel %vm1186, %v1268, 0.0
        %1271 = vadd.xlane.f32.xlu0 %v1270
        %v1272 = vpop.xlane.xlu0 %1271
        %v1273 = vsel %vm243, %v556, 0.0
        %1274 = vadd.xlane.f32.xlu0 %v1273
        %v1275 = vpop.xlane.xlu0 %1274
        %v1276 = vsel %vm243, %v558, 0.0
        %1277 = vadd.xlane.f32.xlu0 %v1276
        %v1278 = vpop.xlane.xlu0 %1277
        %v1279 = vsel %vm243, %v560, 0.0
        %1280 = vadd.xlane.f32.xlu0 %v1279
        %v1281 = vpop.xlane.xlu0 %1280
        %v1282 = vsel %vm243, %v562, 0.0
        %1283 = vadd.xlane.f32.xlu0 %v1282
        %v1284 = vpop.xlane.xlu0 %1283
        %v1285 = vsel %vm243, %v564, 0.0
        %1286 = vadd.xlane.f32.xlu0 %v1285
        %v1287 = vpop.xlane.xlu0 %1286
        %v1288 = vsel %vm243, %v566, 0.0
        %1289 = vadd.xlane.f32.xlu0 %v1288
        %v1290 = vpop.xlane.xlu0 %1289
        %v1291 = vsel %vm243, %v568, 0.0
        %1292 = vadd.xlane.f32.xlu0 %v1291
        %v1293 = vpop.xlane.xlu0 %1292
        %v1294 = vsel %vm243, %v570, 0.0
        %1295 = vadd.xlane.f32.xlu0 %v1294
        %v1296 = vpop.xlane.xlu0 %1295
        %v1305 = vperm.slane %v1275, %v1164
        %v1306 = vperm.slane %v1278, %v1166
        %v1307 = vsel %vm1168, %v1306, %v1305
        %v1308 = vperm.slane %v1281, %v1164
        %v1309 = vperm.slane %v1284, %v1166
        %v1310 = vsel %vm1168, %v1309, %v1308
        %v1311 = vperm.slane %v1287, %v1164
        %v1312 = vperm.slane %v1290, %v1166
        %v1313 = vsel %vm1168, %v1312, %v1311
        %v1314 = vperm.slane %v1293, %v1164
        %v1315 = vperm.slane %v1296, %v1166
        %v1316 = vsel %vm1168, %v1315, %v1314
        %v1317 = vsel %vm1179, %v1310, %v1307
        %v1318 = vsel %vm1181, %v1313, %v1317
        %v1319 = vsel %vm1183, %v1316, %v1318
        %v1321 = vsel %vm1186, %v1319, 0.0
        %1322 = vadd.xlane.f32.xlu0 %v1321
        %v1323 = vpop.xlane.xlu0 %1322
        %1324 = vst.msk [vmem:[#allocation2 + $0x2] sm:$0xff] %vm243, %v1199
        %1325 = vst.msk [vmem:[#allocation2 + $0xa] sm:$0xff] %vm243, %v1201
        %1326 = vst.msk [vmem:[#allocation2 + $0x1a] sm:$0xff] %vm243, %v1203
        %1327 = vst.msk [vmem:[#allocation2 + $0x22] sm:$0xff] %vm243, %v1205
        %1328 = vst.msk [vmem:[#allocation2 + $0x32] sm:$0xff] %vm243, %v1207
        %1329 = vst.msk [vmem:[#allocation2 + $0x3a] sm:$0xff] %vm243, %v1209
        %1330 = vst.msk [vmem:[#allocation2 + $0x4a] sm:$0xff] %vm243, %v1211
        %1331 = vst.msk [vmem:[#allocation2 + $0x52] sm:$0xff] %vm243, %v1213
        %v1332 = vld [vmem:[#allocation2] sm:$0xff]
        %v1333 = vld [vmem:[#allocation2 + $0x8] sm:$0xff]
        %v1334 = vld [vmem:[#allocation2 + $0x18] sm:$0xff]
        %v1335 = vld [vmem:[#allocation2 + $0x20] sm:$0xff]
        %v1336 = vld [vmem:[#allocation2 + $0x30] sm:$0xff]
        %v1337 = vld [vmem:[#allocation2 + $0x38] sm:$0xff]
        %v1338 = vld [vmem:[#allocation2 + $0x48] sm:$0xff]
        %v1339 = vld [vmem:[#allocation2 + $0x50] sm:$0xff]
        %v1340 = vld [vmem:[#allocation2 + $0x1] sm:$0xff]
        %v1341 = vld [vmem:[#allocation2 + $0x9] sm:$0xff]
        %v1342 = vld [vmem:[#allocation2 + $0x19] sm:$0xff]
        %v1343 = vld [vmem:[#allocation2 + $0x21] sm:$0xff]
        %v1344 = vld [vmem:[#allocation2 + $0x31] sm:$0xff]
        %v1345 = vld [vmem:[#allocation2 + $0x39] sm:$0xff]
        %v1346 = vld [vmem:[#allocation2 + $0x49] sm:$0xff]
        %v1347 = vld [vmem:[#allocation2 + $0x51] sm:$0xff]
        %v1348 = vmax.f32 %v1332, %v1340
        %v1349 = vmax.f32 %v1333, %v1341
        %v1350 = vmax.f32 %v1334, %v1342
        %v1351 = vmax.f32 %v1335, %v1343
        %v1352 = vmax.f32 %v1336, %v1344
        %v1353 = vmax.f32 %v1337, %v1345
        %v1354 = vmax.f32 %v1338, %v1346
        %v1355 = vmax.f32 %v1339, %v1347
        %v1356 = vld [vmem:[#allocation2 + $0x2] sm:$0xff]
        %v1357 = vld [vmem:[#allocation2 + $0xa] sm:$0xff]
        %v1358 = vld [vmem:[#allocation2 + $0x1a] sm:$0xff]
        %v1359 = vld [vmem:[#allocation2 + $0x22] sm:$0xff]
        %v1360 = vld [vmem:[#allocation2 + $0x32] sm:$0xff]
        %v1361 = vld [vmem:[#allocation2 + $0x3a] sm:$0xff]
        %v1362 = vld [vmem:[#allocation2 + $0x4a] sm:$0xff]
        %v1363 = vld [vmem:[#allocation2 + $0x52] sm:$0xff]
        %v1364 = vmax.f32 %v1348, %v1356
        %v1365 = vmax.f32 %v1349, %v1357
        %v1366 = vmax.f32 %v1350, %v1358
        %v1367 = vmax.f32 %v1351, %v1359
        %v1368 = vmax.f32 %v1352, %v1360
        %v1369 = vmax.f32 %v1353, %v1361
        %v1370 = vmax.f32 %v1354, %v1362
        %v1371 = vmax.f32 %v1355, %v1363
        %v1372 = vld [vmem:[#allocation2 + $0x3] sm:$0xff]
        %v1373 = vld [vmem:[#allocation2 + $0xb] sm:$0xff]
        %v1374 = vld [vmem:[#allocation2 + $0x1b] sm:$0xff]
        %v1375 = vld [vmem:[#allocation2 + $0x23] sm:$0xff]
        %v1376 = vld [vmem:[#allocation2 + $0x33] sm:$0xff]
        %v1377 = vld [vmem:[#allocation2 + $0x3b] sm:$0xff]
        %v1378 = vld [vmem:[#allocation2 + $0x4b] sm:$0xff]
        %v1379 = vld [vmem:[#allocation2 + $0x53] sm:$0xff]
        %v1380 = vmax.f32 %v1364, %v1372
        %v1381 = vmax.f32 %v1365, %v1373
        %v1382 = vmax.f32 %v1366, %v1374
        %v1383 = vmax.f32 %v1367, %v1375
        %v1384 = vmax.f32 %v1368, %v1376
        %v1385 = vmax.f32 %v1369, %v1377
        %v1386 = vmax.f32 %v1370, %v1378
        %v1387 = vmax.f32 %v1371, %v1379
        %v1388 = vld [vmem:[#allocation2 + $0x4] sm:$0xff]
        %v1389 = vld [vmem:[#allocation2 + $0xc] sm:$0xff]
        %v1390 = vld [vmem:[#allocation2 + $0x1c] sm:$0xff]
        %v1391 = vld [vmem:[#allocation2 + $0x24] sm:$0xff]
        %v1392 = vld [vmem:[#allocation2 + $0x34] sm:$0xff]
        %v1393 = vld [vmem:[#allocation2 + $0x3c] sm:$0xff]
        %v1394 = vld [vmem:[#allocation2 + $0x4c] sm:$0xff]
        %v1395 = vld [vmem:[#allocation2 + $0x54] sm:$0xff]
        %v1396 = vmax.f32 %v1380, %v1388
        %v1397 = vmax.f32 %v1381, %v1389
        %v1398 = vmax.f32 %v1382, %v1390
        %v1399 = vmax.f32 %v1383, %v1391
        %v1400 = vmax.f32 %v1384, %v1392
        %v1401 = vmax.f32 %v1385, %v1393
        %v1402 = vmax.f32 %v1386, %v1394
        %v1403 = vmax.f32 %v1387, %v1395
        %1412 = vrot.lane.b32.xlu0 %v1396, 2
        %v1413 = vpop.permute.xlu0 %1412
        %1414 = vrot.lane.b32.xlu0 %v1397, 2
        %v1415 = vpop.permute.xlu0 %1414
        %1416 = vrot.lane.b32.xlu0 %v1398, 2
        %v1417 = vpop.permute.xlu0 %1416
        %1418 = vrot.lane.b32.xlu0 %v1399, 2
        %v1419 = vpop.permute.xlu0 %1418
        %1420 = vrot.lane.b32.xlu0 %v1400, 2
        %v1421 = vpop.permute.xlu0 %1420
        %1422 = vrot.lane.b32.xlu0 %v1401, 2
        %v1423 = vpop.permute.xlu0 %1422
        %1424 = vrot.lane.b32.xlu0 %v1402, 2
        %v1425 = vpop.permute.xlu0 %1424
        %1426 = vrot.lane.b32.xlu0 %v1403, 2
        %v1427 = vpop.permute.xlu0 %1426
        %1436 = vst.msk [vmem:[#allocation3] sm:$0xff] %vm418, %v1413
        %1437 = vst.msk [vmem:[#allocation3 + $0x8] sm:$0xff] %vm418, %v1415
        %1438 = vst.msk [vmem:[#allocation3 + $0x10] sm:$0xff] %vm418, %v1417
        %1439 = vst.msk [vmem:[#allocation3 + $0x18] sm:$0xff] %vm418, %v1419
        %1440 = vst.msk [vmem:[#allocation3 + $0x20] sm:$0xff] %vm418, %v1421
        %1441 = vst.msk [vmem:[#allocation3 + $0x28] sm:$0xff] %vm418, %v1423
        %1442 = vst.msk [vmem:[#allocation3 + $0x30] sm:$0xff] %vm418, %v1425
        %1443 = vst.msk [vmem:[#allocation3 + $0x38] sm:$0xff] %vm418, %v1427
        %v1444 = vld [vmem:[#allocation3] sm:$0xff]
        %v1445 = vld [vmem:[#allocation3 + $0x8] sm:$0xff]
        %v1446 = vld [vmem:[#allocation3 + $0x10] sm:$0xff]
        %v1447 = vld [vmem:[#allocation3 + $0x18] sm:$0xff]
        %v1448 = vld [vmem:[#allocation3 + $0x20] sm:$0xff]
        %v1449 = vld [vmem:[#allocation3 + $0x28] sm:$0xff]
        %v1450 = vld [vmem:[#allocation3 + $0x30] sm:$0xff]
        %v1451 = vld [vmem:[#allocation3 + $0x38] sm:$0xff]
        %1460 = vrot.lane.b32.xlu0 %v1444, 127
        %v1461 = vpop.permute.xlu0 %1460
        %1462 = vrot.lane.b32.xlu0 %v1445, 127
        %v1463 = vpop.permute.xlu0 %1462
        %1464 = vrot.lane.b32.xlu0 %v1446, 127
        %v1465 = vpop.permute.xlu0 %1464
        %1466 = vrot.lane.b32.xlu0 %v1447, 127
        %v1467 = vpop.permute.xlu0 %1466
        %1468 = vrot.lane.b32.xlu0 %v1448, 127
        %v1469 = vpop.permute.xlu0 %1468
        %1470 = vrot.lane.b32.xlu0 %v1449, 127
        %v1471 = vpop.permute.xlu0 %1470
        %1472 = vrot.lane.b32.xlu0 %v1450, 127
        %v1473 = vpop.permute.xlu0 %1472
        %1474 = vrot.lane.b32.xlu0 %v1451, 127
        %v1475 = vpop.permute.xlu0 %1474
        %v1484 = vmax.f32 %v1444, %v1461
        %v1485 = vmax.f32 %v1445, %v1463
        %v1486 = vmax.f32 %v1446, %v1465
        %v1487 = vmax.f32 %v1447, %v1467
        %v1488 = vmax.f32 %v1448, %v1469
        %v1489 = vmax.f32 %v1449, %v1471
        %v1490 = vmax.f32 %v1450, %v1473
        %v1491 = vmax.f32 %v1451, %v1475
        %1492 = vrot.lane.b32.xlu0 %v1444, 126
        %v1493 = vpop.permute.xlu0 %1492
        %1494 = vrot.lane.b32.xlu0 %v1445, 126
        %v1495 = vpop.permute.xlu0 %1494
        %1496 = vrot.lane.b32.xlu0 %v1446, 126
        %v1497 = vpop.permute.xlu0 %1496
        %1498 = vrot.lane.b32.xlu0 %v1447, 126
        %v1499 = vpop.permute.xlu0 %1498
        %1500 = vrot.lane.b32.xlu0 %v1448, 126
        %v1501 = vpop.permute.xlu0 %1500
        %1502 = vrot.lane.b32.xlu0 %v1449, 126
        %v1503 = vpop.permute.xlu0 %1502
        %1504 = vrot.lane.b32.xlu0 %v1450, 126
        %v1505 = vpop.permute.xlu0 %1504
        %1506 = vrot.lane.b32.xlu0 %v1451, 126
        %v1507 = vpop.permute.xlu0 %1506
        %v1516 = vmax.f32 %v1484, %v1493
        %v1517 = vmax.f32 %v1485, %v1495
        %v1518 = vmax.f32 %v1486, %v1497
        %v1519 = vmax.f32 %v1487, %v1499
        %v1520 = vmax.f32 %v1488, %v1501
        %v1521 = vmax.f32 %v1489, %v1503
        %v1522 = vmax.f32 %v1490, %v1505
        %v1523 = vmax.f32 %v1491, %v1507
        %1524 = vrot.lane.b32.xlu0 %v1444, 125
        %v1525 = vpop.permute.xlu0 %1524
        %1526 = vrot.lane.b32.xlu0 %v1445, 125
        %v1527 = vpop.permute.xlu0 %1526
        %1528 = vrot.lane.b32.xlu0 %v1446, 125
        %v1529 = vpop.permute.xlu0 %1528
        %1530 = vrot.lane.b32.xlu0 %v1447, 125
        %v1531 = vpop.permute.xlu0 %1530
        %1532 = vrot.lane.b32.xlu0 %v1448, 125
        %v1533 = vpop.permute.xlu0 %1532
        %1534 = vrot.lane.b32.xlu0 %v1449, 125
        %v1535 = vpop.permute.xlu0 %1534
        %1536 = vrot.lane.b32.xlu0 %v1450, 125
        %v1537 = vpop.permute.xlu0 %1536
        %1538 = vrot.lane.b32.xlu0 %v1451, 125
        %v1539 = vpop.permute.xlu0 %1538
        %v1548 = vmax.f32 %v1516, %v1525
        %v1549 = vmax.f32 %v1517, %v1527
        %v1550 = vmax.f32 %v1518, %v1529
        %v1551 = vmax.f32 %v1519, %v1531
        %v1552 = vmax.f32 %v1520, %v1533
        %v1553 = vmax.f32 %v1521, %v1535
        %v1554 = vmax.f32 %v1522, %v1537
        %v1555 = vmax.f32 %v1523, %v1539
        %1556 = vrot.lane.b32.xlu0 %v1444, 124
        %v1557 = vpop.permute.xlu0 %1556
        %1558 = vrot.lane.b32.xlu0 %v1445, 124
        %v1559 = vpop.permute.xlu0 %1558
        %1560 = vrot.lane.b32.xlu0 %v1446, 124
        %v1561 = vpop.permute.xlu0 %1560
        %1562 = vrot.lane.b32.xlu0 %v1447, 124
        %v1563 = vpop.permute.xlu0 %1562
        %1564 = vrot.lane.b32.xlu0 %v1448, 124
        %v1565 = vpop.permute.xlu0 %1564
        %1566 = vrot.lane.b32.xlu0 %v1449, 124
        %v1567 = vpop.permute.xlu0 %1566
        %1568 = vrot.lane.b32.xlu0 %v1450, 124
        %v1569 = vpop.permute.xlu0 %1568
        %1570 = vrot.lane.b32.xlu0 %v1451, 124
        %v1571 = vpop.permute.xlu0 %1570
        %v1580 = vmax.f32 %v1548, %v1557
        %v1581 = vmax.f32 %v1549, %v1559
        %v1582 = vmax.f32 %v1550, %v1561
        %v1583 = vmax.f32 %v1551, %v1563
        %v1584 = vmax.f32 %v1552, %v1565
        %v1585 = vmax.f32 %v1553, %v1567
        %v1586 = vmax.f32 %v1554, %v1569
        %v1587 = vmax.f32 %v1555, %v1571
        %v1588 = vmul.f32 %v1580, %v556
        %v1589 = vmul.f32 %v1581, %v558
        %v1590 = vmul.f32 %v1582, %v560
        %v1591 = vmul.f32 %v1583, %v562
        %v1592 = vmul.f32 %v1584, %v564
        %v1593 = vmul.f32 %v1585, %v566
        %v1594 = vmul.f32 %v1586, %v568
        %v1595 = vmul.f32 %v1587, %v570
        %v1596 = vsel %vm243, %v1588, 0.0
        %1597 = vadd.xlane.f32.xlu0 %v1596
        %v1598 = vpop.xlane.xlu0 %1597
        %v1599 = vsel %vm243, %v1589, 0.0
        %1600 = vadd.xlane.f32.xlu0 %v1599
        %v1601 = vpop.xlane.xlu0 %1600
        %v1602 = vsel %vm243, %v1590, 0.0
        %1603 = vadd.xlane.f32.xlu0 %v1602
        %v1604 = vpop.xlane.xlu0 %1603
        %v1605 = vsel %vm243, %v1591, 0.0
        %1606 = vadd.xlane.f32.xlu0 %v1605
        %v1607 = vpop.xlane.xlu0 %1606
        %v1608 = vsel %vm243, %v1592, 0.0
        %1609 = vadd.xlane.f32.xlu0 %v1608
        %v1610 = vpop.xlane.xlu0 %1609
        %v1611 = vsel %vm243, %v1593, 0.0
        %1612 = vadd.xlane.f32.xlu0 %v1611
        %v1613 = vpop.xlane.xlu0 %1612
        %v1614 = vsel %vm243, %v1594, 0.0
        %1615 = vadd.xlane.f32.xlu0 %v1614
        %v1616 = vpop.xlane.xlu0 %1615
        %v1617 = vsel %vm243, %v1595, 0.0
        %1618 = vadd.xlane.f32.xlu0 %v1617
        %v1619 = vpop.xlane.xlu0 %1618
        %v1628 = vperm.slane %v1598, %v1164
        %v1629 = vperm.slane %v1601, %v1166
        %v1630 = vsel %vm1168, %v1629, %v1628
        %v1631 = vperm.slane %v1604, %v1164
        %v1632 = vperm.slane %v1607, %v1166
        %v1633 = vsel %vm1168, %v1632, %v1631
        %v1634 = vperm.slane %v1610, %v1164
        %v1635 = vperm.slane %v1613, %v1166
        %v1636 = vsel %vm1168, %v1635, %v1634
        %v1637 = vperm.slane %v1616, %v1164
        %v1638 = vperm.slane %v1619, %v1166
        %v1639 = vsel %vm1168, %v1638, %v1637
        %v1640 = vsel %vm1179, %v1633, %v1630
        %v1641 = vsel %vm1181, %v1636, %v1640
        %v1642 = vsel %vm1183, %v1639, %v1641
        %v1644 = vsel %vm1186, %v1642, 0.0
        %1645 = vadd.xlane.f32.xlu0 %v1644
        %v1646 = vpop.xlane.xlu0 %1645
        %v1647 = vadd.f32 %v1272, 1e-07
        %v1648 = vrcp.pop %v1647
        %v1649 = vmul.f32 %v1647, %v1648
        %v1650 = vsub.f32 1.0, %v1649
        %v1651 = vmul.f32 %v1648, %v1650
        %v1652 = vadd.f32 %v1648, %v1651
        %vm1653 = vweird.f32 %v1647
        %vm1654 = vweird.f32 %v1648
        %vm1655 = vmor %vm1653, %vm1654
        %v1656 = vsel %vm1655, %v1648, %v1652
        %v1657 = vand.u32 2147483647, %v1647
        %vm1658 = vcmp.eq.f32.partialorder %v1657, 8.507059e+37
        %v1659 = vand.u32 %v1647, 2147483648
        %v1660 = vor.u32 1.1754944e-38, %v1659
        %v1661 = vsel %vm1658, %v1660, %v1656
        %v1662 = vmul.f32 %v1189, %v1661
        %v1663 = vadd.f32 %v1323, 1e-07
        %v1664 = vrcp.pop %v1663
        %v1665 = vmul.f32 %v1663, %v1664
        %v1666 = vsub.f32 1.0, %v1665
        %v1667 = vmul.f32 %v1664, %v1666
        %v1668 = vadd.f32 %v1664, %v1667
        %vm1669 = vweird.f32 %v1663
        %vm1670 = vweird.f32 %v1664
        %vm1671 = vmor %vm1669, %vm1670
        %v1672 = vsel %vm1671, %v1664, %v1668
        %v1673 = vand.u32 2147483647, %v1663
        %vm1674 = vcmp.eq.f32.partialorder %v1673, 8.507059e+37
        %v1675 = vand.u32 %v1663, 2147483648
        %v1676 = vor.u32 1.1754944e-38, %v1675
        %v1677 = vsel %vm1674, %v1676, %v1672
        %v1678 = vmul.f32 %v1646, %v1677
        %v1679 = vmul.f32 %v1662, 2.0
        %v1680 = vmul.f32 %v1679, %v1678
        %v1681 = vadd.f32 %v1662, %v1678
        %v1682 = vadd.f32 %v1681, 1e-07
        %v1683 = vrcp.pop %v1682
        %v1684 = vmul.f32 %v1682, %v1683
        %v1685 = vsub.f32 1.0, %v1684
        %v1686 = vmul.f32 %v1683, %v1685
        %v1687 = vadd.f32 %v1683, %v1686
        %vm1688 = vweird.f32 %v1682
        %vm1689 = vweird.f32 %v1683
        %vm1690 = vmor %vm1688, %vm1689
        %v1691 = vsel %vm1690, %v1683, %v1687
        %v1692 = vand.u32 2147483647, %v1682
        %vm1693 = vcmp.eq.f32.partialorder %v1692, 8.507059e+37
        %v1694 = vand.u32 %v1682, 2147483648
        %v1695 = vor.u32 1.1754944e-38, %v1694
        %v1696 = vsel %vm1693, %v1695, %v1691
        %v1697 = vmul.f32 %v1680, %v1696
        %vm1698 = vcmask 3072
        %1699 = vst.msk [vmem:[%s205] sm:$0xf] %vm1698, %v1697
        %p1700 = scmp.lt.s32.totalorder %s19, 1
        %s1701 = scalar_select %p1700, %s19, 1
        %s1702 = smul.addr %s1701, 4
        %s1703 = scalar_lea.vmem %s2, %s1702
        // Predicated region
        $region37: #{tpu_custom_call.1} parent=27 // pred_check
          %p1704 = pneg %p89
        $region38: #{tpu_custom_call.1} parent=27 // pred_check_branch
          %1706 = sbr.rel (%p1704) target = $region40
        $region39: #{tpu_custom_call.1} parent=27 // pred_region
          _
        $region40: #{tpu_custom_call.1} parent=27 // pred_fallthru
          _
      $region28: #{tpu_custom_call.1} parent=5 // pred_fallthru
        _
      %p1707 = scmp.le.s32.totalorder 2, %s14
      // Predicated region
      $region41: #{tpu_custom_call.1} parent=5 // pred_check
        %p1708 = pneg %p1707
      $region42: #{tpu_custom_call.1} parent=5 // pred_check_branch
        %1710 = sbr.rel (%p1708) target = $region44
      $region43: #{tpu_custom_call.1} parent=5 // pred_region
        %s1711 = ssub.s32 %s14, 2
        // Predicated region
        $region45: #{tpu_custom_call.1} parent=43 // pred_check
          %p1712 = pneg %p95
        $region46: #{tpu_custom_call.1} parent=43 // pred_check_branch
          %1714 = sbr.rel (%p1712) target = $region48
        $region47: #{tpu_custom_call.1} parent=43 // pred_region
          %p1715 = scmp.lt.s32.totalorder %s20, 1
          %s1716 = scalar_select %p1715, %s20, 1
          %s1717 = smul.addr %s1716, 4
          %s1718 = scalar_lea.vmem %s2, %s1717
        $region48: #{tpu_custom_call.1} parent=43 // pred_fallthru
          _
      $region44: #{tpu_custom_call.1} parent=5 // pred_fallthru
        _
    $region6: #{tpu_custom_call.1} parent=1 // loop_footer
      %s18 = sadd.s32 1, %s14
    $region7: #{tpu_custom_call.1} parent=1 // loop_footer_branch
      %13 = sbr.rel target = $region3
    $region8: #{tpu_custom_call.1} parent=1 // loop_exit
      _
    %1719 = vsyncpa [#allocation5], 1
    %s1720 = scalar_lea.sflag [#allocation5], 1
    %1721 = vsyncpa %s1720, 1
    %1722 = vsyncpa [#allocation7], 1
    %s1723 = scalar_lea.sflag [#allocation7], 1
    %1724 = vsyncpa %s1723, 1

</llo_original>
